<compile_context>
chip_gen: v7x
topology: tpu7x:2x2x1
jax: 0.10.0
libtpu: 0.0.40
codegen_flags: <defaults>
</compile_context>

<pallas_src>
import functools

import jax
import jax.numpy as jnp
from jax.experimental import pallas as pl
from jax.experimental.pallas import tpu as pltpu


def _round_up(x, m):
    return ((x + m - 1) // m) * m


def _mos_kernel(x_ref, wp_ref, bp_ref, ws_ref, bs_ref, wc_ref, bc_ref, o_ref,
                *, k_num, hidden_dim):
    """One batch tile.  x_ref: (TB, H); o_ref: (TB, C) f32 log-probs.

    Weights are pre-transposed to (in, out) and pre-cast to bf16 in the
    wrapper; every matmul is `x @ W` on the MXU with f32 accumulation, biases
    are added in f32.
    """
    f32 = jnp.float32
    xb = x_ref[...].astype(jnp.bfloat16)                                # (TB, H)

    # --- mixture prior: softmax over the k components (probability space) ---
    pk = jnp.dot(xb, ws_ref[...], preferred_element_type=f32) + bs_ref[...]
    pk = pk - jnp.max(pk, axis=-1, keepdims=True)
    ek = jnp.exp(pk)
    prior = ek * pl.reciprocal(jnp.sum(ek, axis=-1, keepdims=True), approx=True)  # (TB, K)

    # --- shared non-linear projection (tanh in f32, matmul input in bf16) ---
    proj = jnp.tanh(jnp.dot(xb, wp_ref[...], preferred_element_type=f32) + bp_ref[...])
    proj = proj.astype(jnp.bfloat16)                                    # (TB, K*H)

    wc = wc_ref[...]                                                    # (H, C) bf16
    bc = bc_ref[...]                                                    # (1, C) f32

    # --- per-component softmax accumulated in probability space -------------
    # Static Python loop: k_num is a compile-time constant and the lane slices
    # below are static (and 128-aligned when H % 128 == 0 -> no relayout).
    acc = None
    for k in range(k_num):
        part = proj[:, k * hidden_dim:(k + 1) * hidden_dim]             # (TB, H)
        logits = jnp.dot(part, wc, preferred_element_type=f32) + bc     # (TB, C)
        p = jnp.exp(logits - jnp.max(logits, axis=-1, keepdims=True))
        sm = p * pl.reciprocal(jnp.sum(p, axis=-1, keepdims=True), approx=True)
        w = prior[:, k:k + 1] * sm                                      # (TB, C)
        acc = w if acc is None else acc + w

    # acc is in (0, 1]; classes whose total mixture probability underflows f32
    # would yield -inf, which is an acceptable log-prob tail.
    o_ref[...] = jnp.log(acc).astype(o_ref.dtype)


def mos_forward(hidden_state, w_proj, b_proj, w_ps, b_ps, w_cls, b_cls,
                *, k_num, batch_tile=256):
    """hidden_state: (N, H).  Weights are (in, out); biases are (1, out).

    Returns (N, num_classes) f32 log-probabilities of the mixture of softmaxes.
    N may be arbitrary (zero-padded internally to a multiple of the batch tile).
    """
    N, H = hidden_state.shape
    C = w_cls.shape[1]
    assert w_proj.shape == (H, H * k_num)
    assert w_ps.shape == (H, k_num)

    # Batch tile: big enough to fill the MXU rows, never larger than (padded) N.
    tb = _round_up(min(batch_tile, _round_up(N, 8)), 8)
    n_pad = _round_up(N, tb)
    x = hidden_state
    if n_pad != N:
        x = jnp.pad(x, ((0, n_pad - N), (0, 0)))

    # bf16 matmul inputs (cast once here); biases stay f32 for the f32 epilogue.
    bf16, f32 = jnp.bfloat16, jnp.float32
    wp, ws, wc = w_proj.astype(bf16), w_ps.astype(bf16), w_cls.astype(bf16)
    bp, bs, bc = b_proj.astype(f32), b_ps.astype(f32), b_cls.astype(f32)

    kernel = functools.partial(_mos_kernel, k_num=k_num, hidden_dim=H)
    const = lambda i: (0, 0)   # weights: same block for every batch tile

    # Rough VMEM budget: single-buffered weights + double-buffered x/out tiles
    # + f32 intermediates (proj, per-k logits/probs, accumulator).
    weight_bytes = 2 * (wp.size + ws.size + wc.size) + 4 * (bp.size + bs.size + bc.size)
    act_bytes = 4 * tb * (2 * H + 4 * k_num * H + 6 * C)
    vmem_limit = int(min(100 * 2 ** 20, max(32 * 2 ** 20, 2 * weight_bytes + act_bytes)))

    def build(weight_pipeline_mode):
        wspec = lambda shape: pl.BlockSpec(shape, const,
                                           pipeline_mode=weight_pipeline_mode)
        return pl.pallas_call(
            kernel,
            out_shape=jax.ShapeDtypeStruct((n_pad, C), f32),
            grid=(n_pad // tb,),
            in_specs=[
                pl.BlockSpec((tb, H), lambda i: (i, 0)),   # hidden_state tile
                wspec((H, H * k_num)),                     # W_proj
                wspec((1, H * k_num)),                     # b_proj
                wspec((H, k_num)),                         # W_ps
                wspec((1, k_num)),                         # b_ps
                wspec((H, C)),                             # W_cls
                wspec((1, C)),                             # b_cls
            ],
            out_specs=pl.BlockSpec((tb, C), lambda i: (i, 0)),
            compiler_params=pltpu.CompilerParams(
                # batch tiles are independent -> shard across both TCs on v7x
                dimension_semantics=("parallel",),
                vmem_limit_bytes=vmem_limit,
            ),
        )

    try:
        # Weights are fetched once (constant index map) -> single buffer is
        # enough and halves their VMEM residency (important on v7x).
        out = build(pl.Buffered(1))(x, wp, bp, ws, bs, wc, bc)
    except Exception:
        # Fallback for JAX versions that reject single-buffered BlockSpecs.
        out = build(None)(x, wp, bp, ws, bs, wc, bc)

    return out[:N] if n_pad != N else out


def _mos_reference(x, w_proj, b_proj, w_ps, b_ps, w_cls, b_cls, *, k_num):
    """Pure-JAX f32 reference matching the PyTorch MoS.forward."""
    proj = jnp.tanh(x @ w_proj + b_proj)                        # (N, K*H)
    log_pk = jax.nn.log_softmax(x @ w_ps + b_ps, axis=-1)       # (N, K)
    parts = jnp.split(proj, k_num, axis=1)                      # torch.chunk(dim=1)
    logs = [jax.nn.log_softmax(p @ w_cls + b_cls, axis=-1) for p in parts]
    res = jnp.stack(logs, axis=1)                               # (N, K, C)
    res = log_pk[:, :, None] + res
    return jax.scipy.special.logsumexp(res, axis=1)             # (N, C)


if __name__ == "__main__":
    # Small but lane-aligned shapes: batch=16, hidden=128, k=4, classes=256.
    N, H, K, C = 16, 128, 4, 256

    key = jax.random.PRNGKey(0)
    ks = jax.random.split(key, 7)
    hidden_state = jax.random.normal(ks[0], (N, H), dtype=jnp.float32)
    # Linear weights pre-transposed to (in, out); biases as (1, out).
    w_proj = jax.random.normal(ks[1], (H, H * K), dtype=jnp.float32) * 0.1
    b_proj = jax.random.normal(ks[2], (1, H * K), dtype=jnp.float32) * 0.1
    w_ps = jax.random.normal(ks[3], (H, K), dtype=jnp.float32) * 0.1
    b_ps = jax.random.normal(ks[4], (1, K), dtype=jnp.float32) * 0.1
    w_cls = jax.random.normal(ks[5], (H, C), dtype=jnp.float32) * 0.1
    b_cls = jax.random.normal(ks[6], (1, C), dtype=jnp.float32) * 0.1

    out = mos_forward(hidden_state, w_proj, b_proj, w_ps, b_ps, w_cls, b_cls,
                      k_num=K, batch_tile=256)
    out = jax.block_until_ready(out)
    assert out.shape == (N, C)
    assert out.dtype == jnp.float32

    # Loose check vs. the full-f32 reference (documents the bf16 matmul-input
    # quantization the kernel deliberately uses for MXU throughput).
    ref = _mos_reference(hidden_state, w_proj, b_proj, w_ps, b_ps, w_cls, b_cls,
                         k_num=K)
    err = float(jnp.max(jnp.abs(out - ref)))
    assert jnp.allclose(out, ref, rtol=5e-2, atol=5e-2), f"f32-ref mismatch {err}"

    # Tight check vs. a reference fed the same bf16-rounded matmul inputs.
    q = lambda a: a.astype(jnp.bfloat16).astype(jnp.float32)
    ref_q = _mos_reference(q(hidden_state), q(w_proj), b_proj, q(w_ps), b_ps,
                           q(w_cls), b_cls, k_num=K)
    err_q = float(jnp.max(jnp.abs(out - ref_q)))
    assert jnp.allclose(out, ref_q, rtol=1e-2, atol=1e-2), f"bf16-ref mismatch {err_q}"

    # Sanity: each row is a log-probability vector (sums to 1 in prob space).
    assert jnp.allclose(jnp.sum(jnp.exp(out), axis=-1), 1.0, atol=5e-3)

    print("KERNEL_OK")
</pallas_src>

<mosaic_0001>
module attributes {stable_mosaic.version = 11 : i64} {
  func.func @_mos_kernel(%arg0: i32, %arg1: memref<16x128xf32, #tpu.memory_space<vmem>>, %arg2: memref<128x512xbf16, #tpu.memory_space<vmem>>, %arg3: memref<1x512xf32, #tpu.memory_space<vmem>>, %arg4: memref<128x4xbf16, #tpu.memory_space<vmem>>, %arg5: memref<1x4xf32, #tpu.memory_space<vmem>>, %arg6: memref<128x256xbf16, #tpu.memory_space<vmem>>, %arg7: memref<1x256xf32, #tpu.memory_space<vmem>>, %arg8: memref<16x256xf32, #tpu.memory_space<vmem>>) attributes {dimension_semantics = [#tpu.dimension_semantics<parallel>], iteration_bounds = array<i64: 1>, scalar_prefetch = 0 : i64, scratch_operands = 0 : i64, tpu.core_type = #tpu.core_type<tc>, window_params = [{transform_indices = @transform_0, window_bounds = array<i64: 16, 128>}, {pipeline_mode = #tpu.pipeline_mode<synchronous>, transform_indices = @transform_1, window_bounds = array<i64: 128, 512>}, {pipeline_mode = #tpu.pipeline_mode<synchronous>, transform_indices = @transform_2, window_bounds = array<i64: 1, 512>}, {pipeline_mode = #tpu.pipeline_mode<synchronous>, transform_indices = @transform_3, window_bounds = array<i64: 128, 4>}, {pipeline_mode = #tpu.pipeline_mode<synchronous>, transform_indices = @transform_4, window_bounds = array<i64: 1, 4>}, {pipeline_mode = #tpu.pipeline_mode<synchronous>, transform_indices = @transform_5, window_bounds = array<i64: 128, 256>}, {pipeline_mode = #tpu.pipeline_mode<synchronous>, transform_indices = @transform_6, window_bounds = array<i64: 1, 256>}, {transform_indices = @transform_7, window_bounds = array<i64: 16, 256>}]} {
    %c0 = arith.constant 0 : index
    %c0_0 = arith.constant 0 : index
    %0 = vector.load %arg1[%c0, %c0_0] : memref<16x128xf32, #tpu.memory_space<vmem>>, vector<16x128xf32>
    %1 = arith.truncf %0 : vector<16x128xf32> to vector<16x128xbf16>
    %c0_1 = arith.constant 0 : index
    %c0_2 = arith.constant 0 : index
    %2 = vector.load %arg4[%c0_1, %c0_2] : memref<128x4xbf16, #tpu.memory_space<vmem>>, vector<128x4xbf16>
    %cst = arith.constant dense<0.000000e+00> : vector<16x4xf32>
    %3 = tpu.matmul %1, %2, %cst {dimension_numbers = #tpu.dot_dimension_numbers<[1], [0], [0], [1], [0, 0, 1, 1], [], []>} : vector<16x128xbf16>, vector<128x4xbf16>, vector<16x4xf32> -> vector<16x4xf32>
    %c0_3 = arith.constant 0 : index
    %c0_4 = arith.constant 0 : index
    %4 = vector.load %arg5[%c0_3, %c0_4] : memref<1x4xf32, #tpu.memory_space<vmem>>, vector<1x4xf32>
    %5 = vector.broadcast %4 : vector<1x4xf32> to vector<16x4xf32>
    %6 = arith.addf %3, %5 : vector<16x4xf32>
    %cst_5 = arith.constant dense<0xFF800000> : vector<16xf32>
    %7 = vector.multi_reduction <maximumf>, %6, %cst_5 [1] : vector<16x4xf32> to vector<16xf32>
    %8 = vector.shape_cast %7 : vector<16xf32> to vector<16x1xf32>
    %9 = vector.broadcast %8 : vector<16x1xf32> to vector<16x4xf32>
    %10 = arith.subf %6, %9 : vector<16x4xf32>
    %11 = math.exp %10 : vector<16x4xf32>
    %cst_6 = arith.constant dense<0.000000e+00> : vector<16xf32>
    %12 = vector.multi_reduction <add>, %11, %cst_6 [1] : vector<16x4xf32> to vector<16xf32>
    %13 = vector.shape_cast %12 : vector<16xf32> to vector<16x1xf32>
    %14 = tpu.reciprocal %13 {approx = true} : vector<16x1xf32> -> vector<16x1xf32>
    %15 = vector.broadcast %14 : vector<16x1xf32> to vector<16x4xf32>
    %16 = arith.mulf %11, %15 : vector<16x4xf32>
    %c0_7 = arith.constant 0 : index
    %c0_8 = arith.constant 0 : index
    %17 = vector.load %arg2[%c0_7, %c0_8] : memref<128x512xbf16, #tpu.memory_space<vmem>>, vector<128x512xbf16>
    %cst_9 = arith.constant dense<0.000000e+00> : vector<16x512xf32>
    %18 = tpu.matmul %1, %17, %cst_9 {dimension_numbers = #tpu.dot_dimension_numbers<[1], [0], [0], [1], [0, 0, 1, 1], [], []>} : vector<16x128xbf16>, vector<128x512xbf16>, vector<16x512xf32> -> vector<16x512xf32>
    %c0_10 = arith.constant 0 : index
    %c0_11 = arith.constant 0 : index
    %19 = vector.load %arg3[%c0_10, %c0_11] : memref<1x512xf32, #tpu.memory_space<vmem>>, vector<1x512xf32>
    %20 = vector.broadcast %19 : vector<1x512xf32> to vector<16x512xf32>
    %21 = arith.addf %18, %20 : vector<16x512xf32>
    %22 = math.tanh %21 : vector<16x512xf32>
    %23 = arith.truncf %22 : vector<16x512xf32> to vector<16x512xbf16>
    %c0_12 = arith.constant 0 : index
    %c0_13 = arith.constant 0 : index
    %24 = vector.load %arg6[%c0_12, %c0_13] : memref<128x256xbf16, #tpu.memory_space<vmem>>, vector<128x256xbf16>
    %c0_14 = arith.constant 0 : index
    %c0_15 = arith.constant 0 : index
    %25 = vector.load %arg7[%c0_14, %c0_15] : memref<1x256xf32, #tpu.memory_space<vmem>>, vector<1x256xf32>
    %26 = vector.extract_strided_slice %23 {offsets = [0, 0], sizes = [16, 128], strides = [1, 1]} : vector<16x512xbf16> to vector<16x128xbf16>
    %cst_16 = arith.constant dense<0.000000e+00> : vector<16x256xf32>
    %27 = tpu.matmul %26, %24, %cst_16 {dimension_numbers = #tpu.dot_dimension_numbers<[1], [0], [0], [1], [0, 0, 1, 1], [], []>} : vector<16x128xbf16>, vector<128x256xbf16>, vector<16x256xf32> -> vector<16x256xf32>
    %28 = vector.broadcast %25 : vector<1x256xf32> to vector<16x256xf32>
    %29 = arith.addf %27, %28 : vector<16x256xf32>
    %cst_17 = arith.constant dense<0xFF800000> : vector<16xf32>
    %30 = vector.multi_reduction <maximumf>, %29, %cst_17 [1] : vector<16x256xf32> to vector<16xf32>
    %31 = vector.shape_cast %30 : vector<16xf32> to vector<16x1xf32>
    %32 = vector.broadcast %31 : vector<16x1xf32> to vector<16x256xf32>
    %33 = arith.subf %29, %32 : vector<16x256xf32>
    %34 = math.exp %33 : vector<16x256xf32>
    %cst_18 = arith.constant dense<0.000000e+00> : vector<16xf32>
    %35 = vector.multi_reduction <add>, %34, %cst_18 [1] : vector<16x256xf32> to vector<16xf32>
    %36 = vector.shape_cast %35 : vector<16xf32> to vector<16x1xf32>
    %37 = tpu.reciprocal %36 {approx = true} : vector<16x1xf32> -> vector<16x1xf32>
    %38 = vector.broadcast %37 : vector<16x1xf32> to vector<16x256xf32>
    %39 = arith.mulf %34, %38 : vector<16x256xf32>
    %40 = vector.extract_strided_slice %16 {offsets = [0, 0], sizes = [16, 1], strides = [1, 1]} : vector<16x4xf32> to vector<16x1xf32>
    %41 = vector.broadcast %40 : vector<16x1xf32> to vector<16x256xf32>
    %42 = arith.mulf %41, %39 : vector<16x256xf32>
    %43 = vector.extract_strided_slice %23 {offsets = [0, 128], sizes = [16, 128], strides = [1, 1]} : vector<16x512xbf16> to vector<16x128xbf16>
    %cst_19 = arith.constant dense<0.000000e+00> : vector<16x256xf32>
    %44 = tpu.matmul %43, %24, %cst_19 {dimension_numbers = #tpu.dot_dimension_numbers<[1], [0], [0], [1], [0, 0, 1, 1], [], []>} : vector<16x128xbf16>, vector<128x256xbf16>, vector<16x256xf32> -> vector<16x256xf32>
    %45 = vector.broadcast %25 : vector<1x256xf32> to vector<16x256xf32>
    %46 = arith.addf %44, %45 : vector<16x256xf32>
    %cst_20 = arith.constant dense<0xFF800000> : vector<16xf32>
    %47 = vector.multi_reduction <maximumf>, %46, %cst_20 [1] : vector<16x256xf32> to vector<16xf32>
    %48 = vector.shape_cast %47 : vector<16xf32> to vector<16x1xf32>
    %49 = vector.broadcast %48 : vector<16x1xf32> to vector<16x256xf32>
    %50 = arith.subf %46, %49 : vector<16x256xf32>
    %51 = math.exp %50 : vector<16x256xf32>
    %cst_21 = arith.constant dense<0.000000e+00> : vector<16xf32>
    %52 = vector.multi_reduction <add>, %51, %cst_21 [1] : vector<16x256xf32> to vector<16xf32>
    %53 = vector.shape_cast %52 : vector<16xf32> to vector<16x1xf32>
    %54 = tpu.reciprocal %53 {approx = true} : vector<16x1xf32> -> vector<16x1xf32>
    %55 = vector.broadcast %54 : vector<16x1xf32> to vector<16x256xf32>
    %56 = arith.mulf %51, %55 : vector<16x256xf32>
    %57 = vector.extract_strided_slice %16 {offsets = [0, 1], sizes = [16, 1], strides = [1, 1]} : vector<16x4xf32> to vector<16x1xf32>
    %58 = vector.broadcast %57 : vector<16x1xf32> to vector<16x256xf32>
    %59 = arith.mulf %58, %56 : vector<16x256xf32>
    %60 = arith.addf %42, %59 : vector<16x256xf32>
    %61 = vector.extract_strided_slice %23 {offsets = [0, 256], sizes = [16, 128], strides = [1, 1]} : vector<16x512xbf16> to vector<16x128xbf16>
    %cst_22 = arith.constant dense<0.000000e+00> : vector<16x256xf32>
    %62 = tpu.matmul %61, %24, %cst_22 {dimension_numbers = #tpu.dot_dimension_numbers<[1], [0], [0], [1], [0, 0, 1, 1], [], []>} : vector<16x128xbf16>, vector<128x256xbf16>, vector<16x256xf32> -> vector<16x256xf32>
    %63 = vector.broadcast %25 : vector<1x256xf32> to vector<16x256xf32>
    %64 = arith.addf %62, %63 : vector<16x256xf32>
    %cst_23 = arith.constant dense<0xFF800000> : vector<16xf32>
    %65 = vector.multi_reduction <maximumf>, %64, %cst_23 [1] : vector<16x256xf32> to vector<16xf32>
    %66 = vector.shape_cast %65 : vector<16xf32> to vector<16x1xf32>
    %67 = vector.broadcast %66 : vector<16x1xf32> to vector<16x256xf32>
    %68 = arith.subf %64, %67 : vector<16x256xf32>
    %69 = math.exp %68 : vector<16x256xf32>
    %cst_24 = arith.constant dense<0.000000e+00> : vector<16xf32>
    %70 = vector.multi_reduction <add>, %69, %cst_24 [1] : vector<16x256xf32> to vector<16xf32>
    %71 = vector.shape_cast %70 : vector<16xf32> to vector<16x1xf32>
    %72 = tpu.reciprocal %71 {approx = true} : vector<16x1xf32> -> vector<16x1xf32>
    %73 = vector.broadcast %72 : vector<16x1xf32> to vector<16x256xf32>
    %74 = arith.mulf %69, %73 : vector<16x256xf32>
    %75 = vector.extract_strided_slice %16 {offsets = [0, 2], sizes = [16, 1], strides = [1, 1]} : vector<16x4xf32> to vector<16x1xf32>
    %76 = vector.broadcast %75 : vector<16x1xf32> to vector<16x256xf32>
    %77 = arith.mulf %76, %74 : vector<16x256xf32>
    %78 = arith.addf %60, %77 : vector<16x256xf32>
    %79 = vector.extract_strided_slice %23 {offsets = [0, 384], sizes = [16, 128], strides = [1, 1]} : vector<16x512xbf16> to vector<16x128xbf16>
    %cst_25 = arith.constant dense<0.000000e+00> : vector<16x256xf32>
    %80 = tpu.matmul %79, %24, %cst_25 {dimension_numbers = #tpu.dot_dimension_numbers<[1], [0], [0], [1], [0, 0, 1, 1], [], []>} : vector<16x128xbf16>, vector<128x256xbf16>, vector<16x256xf32> -> vector<16x256xf32>
    %81 = vector.broadcast %25 : vector<1x256xf32> to vector<16x256xf32>
    %82 = arith.addf %80, %81 : vector<16x256xf32>
    %cst_26 = arith.constant dense<0xFF800000> : vector<16xf32>
    %83 = vector.multi_reduction <maximumf>, %82, %cst_26 [1] : vector<16x256xf32> to vector<16xf32>
    %84 = vector.shape_cast %83 : vector<16xf32> to vector<16x1xf32>
    %85 = vector.broadcast %84 : vector<16x1xf32> to vector<16x256xf32>
    %86 = arith.subf %82, %85 : vector<16x256xf32>
    %87 = math.exp %86 : vector<16x256xf32>
    %cst_27 = arith.constant dense<0.000000e+00> : vector<16xf32>
    %88 = vector.multi_reduction <add>, %87, %cst_27 [1] : vector<16x256xf32> to vector<16xf32>
    %89 = vector.shape_cast %88 : vector<16xf32> to vector<16x1xf32>
    %90 = tpu.reciprocal %89 {approx = true} : vector<16x1xf32> -> vector<16x1xf32>
    %91 = vector.broadcast %90 : vector<16x1xf32> to vector<16x256xf32>
    %92 = arith.mulf %87, %91 : vector<16x256xf32>
    %93 = vector.extract_strided_slice %16 {offsets = [0, 3], sizes = [16, 1], strides = [1, 1]} : vector<16x4xf32> to vector<16x1xf32>
    %94 = vector.broadcast %93 : vector<16x1xf32> to vector<16x256xf32>
    %95 = arith.mulf %94, %92 : vector<16x256xf32>
    %96 = arith.addf %78, %95 : vector<16x256xf32>
    %97 = math.log %96 : vector<16x256xf32>
    %c0_28 = arith.constant 0 : index
    %c0_29 = arith.constant 0 : index
    %98 = vector.load %arg8[%c0_28, %c0_29] : memref<16x256xf32, #tpu.memory_space<vmem>>, vector<16x256xf32>
    tpu.vector_store %arg8[%c0_28, %c0_29], %97 {strides = array<i32>} : memref<16x256xf32, #tpu.memory_space<vmem>>, vector<16x256xf32>,
    return
  }
  func.func @transform_0(%arg0: i32) -> (i32, i32) {
    %c0_i32 = arith.constant 0 : i32
    %c0_i32_0 = arith.constant 0 : i32
    return %arg0, %c0_i32 : i32, i32
  }
  func.func @transform_1(%arg0: i32) -> (i32, i32) {
    %c0_i32 = arith.constant 0 : i32
    %c0_i32_0 = arith.constant 0 : i32
    %c0_i32_1 = arith.constant 0 : i32
    return %c0_i32, %c0_i32_0 : i32, i32
  }
  func.func @transform_2(%arg0: i32) -> (i32, i32) {
    %c0_i32 = arith.constant 0 : i32
    %c0_i32_0 = arith.constant 0 : i32
    %c0_i32_1 = arith.constant 0 : i32
    return %c0_i32, %c0_i32_0 : i32, i32
  }
  func.func @transform_3(%arg0: i32) -> (i32, i32) {
    %c0_i32 = arith.constant 0 : i32
    %c0_i32_0 = arith.constant 0 : i32
    %c0_i32_1 = arith.constant 0 : i32
    return %c0_i32, %c0_i32_0 : i32, i32
  }
  func.func @transform_4(%arg0: i32) -> (i32, i32) {
    %c0_i32 = arith.constant 0 : i32
    %c0_i32_0 = arith.constant 0 : i32
    %c0_i32_1 = arith.constant 0 : i32
    return %c0_i32, %c0_i32_0 : i32, i32
  }
  func.func @transform_5(%arg0: i32) -> (i32, i32) {
    %c0_i32 = arith.constant 0 : i32
    %c0_i32_0 = arith.constant 0 : i32
    %c0_i32_1 = arith.constant 0 : i32
    return %c0_i32, %c0_i32_0 : i32, i32
  }
  func.func @transform_6(%arg0: i32) -> (i32, i32) {
    %c0_i32 = arith.constant 0 : i32
    %c0_i32_0 = arith.constant 0 : i32
    %c0_i32_1 = arith.constant 0 : i32
    return %c0_i32, %c0_i32_0 : i32, i32
  }
  func.func @transform_7(%arg0: i32) -> (i32, i32) {
    %c0_i32 = arith.constant 0 : i32
    %c0_i32_0 = arith.constant 0 : i32
    return %arg0, %c0_i32 : i32, i32
  }
}

module attributes {stable_mosaic.version = 11 : i64} {
  func.func @_mos_kernel(%arg0: i32, %arg1: memref<16x128xf32, #tpu.memory_space<vmem>>, %arg2: memref<128x512xbf16, #tpu.memory_space<vmem>>, %arg3: memref<1x512xf32, #tpu.memory_space<vmem>>, %arg4: memref<128x4xbf16, #tpu.memory_space<vmem>>, %arg5: memref<1x4xf32, #tpu.memory_space<vmem>>, %arg6: memref<128x256xbf16, #tpu.memory_space<vmem>>, %arg7: memref<1x256xf32, #tpu.memory_space<vmem>>, %arg8: memref<16x256xf32, #tpu.memory_space<vmem>>) attributes {dimension_semantics = [#tpu.dimension_semantics<parallel>], iteration_bounds = array<i64: 1>, scalar_prefetch = 0 : i64, scratch_operands = 0 : i64, tpu.core_type = #tpu.core_type<tc>, window_params = [{transform_indices = @transform_0, window_bounds = array<i64: 16, 128>}, {pipeline_mode = #tpu.pipeline_mode<synchronous>, transform_indices = @transform_1, window_bounds = array<i64: 128, 512>}, {pipeline_mode = #tpu.pipeline_mode<synchronous>, transform_indices = @transform_2, window_bounds = array<i64: 1, 512>}, {pipeline_mode = #tpu.pipeline_mode<synchronous>, transform_indices = @transform_3, window_bounds = array<i64: 128, 4>}, {pipeline_mode = #tpu.pipeline_mode<synchronous>, transform_indices = @transform_4, window_bounds = array<i64: 1, 4>}, {pipeline_mode = #tpu.pipeline_mode<synchronous>, transform_indices = @transform_5, window_bounds = array<i64: 128, 256>}, {pipeline_mode = #tpu.pipeline_mode<synchronous>, transform_indices = @transform_6, window_bounds = array<i64: 1, 256>}, {transform_indices = @transform_7, window_bounds = array<i64: 16, 256>}]} {
    %c0 = arith.constant 0 : index
    %c0_0 = arith.constant 0 : index
    %0 = vector.load %arg1[%c0, %c0_0] : memref<16x128xf32, #tpu.memory_space<vmem>>, vector<16x128xf32>
    %1 = arith.truncf %0 : vector<16x128xf32> to vector<16x128xbf16>
    %c0_1 = arith.constant 0 : index
    %c0_2 = arith.constant 0 : index
    %2 = vector.load %arg4[%c0_1, %c0_2] : memref<128x4xbf16, #tpu.memory_space<vmem>>, vector<128x4xbf16>
    %cst = arith.constant dense<0.000000e+00> : vector<16x4xf32>
    %3 = tpu.matmul %1, %2, %cst {dimension_numbers = #tpu.dot_dimension_numbers<[1], [0], [0], [1], [0, 0, 1, 1], [], []>} : vector<16x128xbf16>, vector<128x4xbf16>, vector<16x4xf32> -> vector<16x4xf32>
    %c0_3 = arith.constant 0 : index
    %c0_4 = arith.constant 0 : index
    %4 = vector.load %arg5[%c0_3, %c0_4] : memref<1x4xf32, #tpu.memory_space<vmem>>, vector<1x4xf32>
    %5 = vector.broadcast %4 : vector<1x4xf32> to vector<16x4xf32>
    %6 = arith.addf %3, %5 : vector<16x4xf32>
    %cst_5 = arith.constant dense<0xFF800000> : vector<16xf32>
    %7 = vector.multi_reduction <maximumf>, %6, %cst_5 [1] : vector<16x4xf32> to vector<16xf32>
    %8 = vector.shape_cast %7 : vector<16xf32> to vector<16x1xf32>
    %9 = vector.broadcast %8 : vector<16x1xf32> to vector<16x4xf32>
    %10 = arith.subf %6, %9 : vector<16x4xf32>
    %11 = math.exp %10 : vector<16x4xf32>
    %cst_6 = arith.constant dense<0.000000e+00> : vector<16xf32>
    %12 = vector.multi_reduction <add>, %11, %cst_6 [1] : vector<16x4xf32> to vector<16xf32>
    %13 = vector.shape_cast %12 : vector<16xf32> to vector<16x1xf32>
    %14 = tpu.reciprocal %13 {approx = true} : vector<16x1xf32> -> vector<16x1xf32>
    %15 = vector.broadcast %14 : vector<16x1xf32> to vector<16x4xf32>
    %16 = arith.mulf %11, %15 : vector<16x4xf32>
    %c0_7 = arith.constant 0 : index
    %c0_8 = arith.constant 0 : index
    %17 = vector.load %arg2[%c0_7, %c0_8] : memref<128x512xbf16, #tpu.memory_space<vmem>>, vector<128x512xbf16>
    %cst_9 = arith.constant dense<0.000000e+00> : vector<16x512xf32>
    %18 = tpu.matmul %1, %17, %cst_9 {dimension_numbers = #tpu.dot_dimension_numbers<[1], [0], [0], [1], [0, 0, 1, 1], [], []>} : vector<16x128xbf16>, vector<128x512xbf16>, vector<16x512xf32> -> vector<16x512xf32>
    %c0_10 = arith.constant 0 : index
    %c0_11 = arith.constant 0 : index
    %19 = vector.load %arg3[%c0_10, %c0_11] : memref<1x512xf32, #tpu.memory_space<vmem>>, vector<1x512xf32>
    %20 = vector.broadcast %19 : vector<1x512xf32> to vector<16x512xf32>
    %21 = arith.addf %18, %20 : vector<16x512xf32>
    %22 = math.tanh %21 : vector<16x512xf32>
    %23 = arith.truncf %22 : vector<16x512xf32> to vector<16x512xbf16>
    %c0_12 = arith.constant 0 : index
    %c0_13 = arith.constant 0 : index
    %24 = vector.load %arg6[%c0_12, %c0_13] : memref<128x256xbf16, #tpu.memory_space<vmem>>, vector<128x256xbf16>
    %c0_14 = arith.constant 0 : index
    %c0_15 = arith.constant 0 : index
    %25 = vector.load %arg7[%c0_14, %c0_15] : memref<1x256xf32, #tpu.memory_space<vmem>>, vector<1x256xf32>
    %26 = vector.extract_strided_slice %23 {offsets = [0, 0], sizes = [16, 128], strides = [1, 1]} : vector<16x512xbf16> to vector<16x128xbf16>
    %cst_16 = arith.constant dense<0.000000e+00> : vector<16x256xf32>
    %27 = tpu.matmul %26, %24, %cst_16 {dimension_numbers = #tpu.dot_dimension_numbers<[1], [0], [0], [1], [0, 0, 1, 1], [], []>} : vector<16x128xbf16>, vector<128x256xbf16>, vector<16x256xf32> -> vector<16x256xf32>
    %28 = vector.broadcast %25 : vector<1x256xf32> to vector<16x256xf32>
    %29 = arith.addf %27, %28 : vector<16x256xf32>
    %cst_17 = arith.constant dense<0xFF800000> : vector<16xf32>
    %30 = vector.multi_reduction <maximumf>, %29, %cst_17 [1] : vector<16x256xf32> to vector<16xf32>
    %31 = vector.shape_cast %30 : vector<16xf32> to vector<16x1xf32>
    %32 = vector.broadcast %31 : vector<16x1xf32> to vector<16x256xf32>
    %33 = arith.subf %29, %32 : vector<16x256xf32>
    %34 = math.exp %33 : vector<16x256xf32>
    %cst_18 = arith.constant dense<0.000000e+00> : vector<16xf32>
    %35 = vector.multi_reduction <add>, %34, %cst_18 [1] : vector<16x256xf32> to vector<16xf32>
    %36 = vector.shape_cast %35 : vector<16xf32> to vector<16x1xf32>
    %37 = tpu.reciprocal %36 {approx = true} : vector<16x1xf32> -> vector<16x1xf32>
    %38 = vector.broadcast %37 : vector<16x1xf32> to vector<16x256xf32>
    %39 = arith.mulf %34, %38 : vector<16x256xf32>
    %40 = vector.extract_strided_slice %16 {offsets = [0, 0], sizes = [16, 1], strides = [1, 1]} : vector<16x4xf32> to vector<16x1xf32>
    %41 = vector.broadcast %40 : vector<16x1xf32> to vector<16x256xf32>
    %42 = arith.mulf %41, %39 : vector<16x256xf32>
    %43 = vector.extract_strided_slice %23 {offsets = [0, 128], sizes = [16, 128], strides = [1, 1]} : vector<16x512xbf16> to vector<16x128xbf16>
    %cst_19 = arith.constant dense<0.000000e+00> : vector<16x256xf32>
    %44 = tpu.matmul %43, %24, %cst_19 {dimension_numbers = #tpu.dot_dimension_numbers<[1], [0], [0], [1], [0, 0, 1, 1], [], []>} : vector<16x128xbf16>, vector<128x256xbf16>, vector<16x256xf32> -> vector<16x256xf32>
    %45 = vector.broadcast %25 : vector<1x256xf32> to vector<16x256xf32>
    %46 = arith.addf %44, %45 : vector<16x256xf32>
    %cst_20 = arith.constant dense<0xFF800000> : vector<16xf32>
    %47 = vector.multi_reduction <maximumf>, %46, %cst_20 [1] : vector<16x256xf32> to vector<16xf32>
    %48 = vector.shape_cast %47 : vector<16xf32> to vector<16x1xf32>
    %49 = vector.broadcast %48 : vector<16x1xf32> to vector<16x256xf32>
    %50 = arith.subf %46, %49 : vector<16x256xf32>
    %51 = math.exp %50 : vector<16x256xf32>
    %cst_21 = arith.constant dense<0.000000e+00> : vector<16xf32>
    %52 = vector.multi_reduction <add>, %51, %cst_21 [1] : vector<16x256xf32> to vector<16xf32>
    %53 = vector.shape_cast %52 : vector<16xf32> to vector<16x1xf32>
    %54 = tpu.reciprocal %53 {approx = true} : vector<16x1xf32> -> vector<16x1xf32>
    %55 = vector.broadcast %54 : vector<16x1xf32> to vector<16x256xf32>
    %56 = arith.mulf %51, %55 : vector<16x256xf32>
    %57 = vector.extract_strided_slice %16 {offsets = [0, 1], sizes = [16, 1], strides = [1, 1]} : vector<16x4xf32> to vector<16x1xf32>
    %58 = vector.broadcast %57 : vector<16x1xf32> to vector<16x256xf32>
    %59 = arith.mulf %58, %56 : vector<16x256xf32>
    %60 = arith.addf %42, %59 : vector<16x256xf32>
    %61 = vector.extract_strided_slice %23 {offsets = [0, 256], sizes = [16, 128], strides = [1, 1]} : vector<16x512xbf16> to vector<16x128xbf16>
    %cst_22 = arith.constant dense<0.000000e+00> : vector<16x256xf32>
    %62 = tpu.matmul %61, %24, %cst_22 {dimension_numbers = #tpu.dot_dimension_numbers<[1], [0], [0], [1], [0, 0, 1, 1], [], []>} : vector<16x128xbf16>, vector<128x256xbf16>, vector<16x256xf32> -> vector<16x256xf32>
    %63 = vector.broadcast %25 : vector<1x256xf32> to vector<16x256xf32>
    %64 = arith.addf %62, %63 : vector<16x256xf32>
    %cst_23 = arith.constant dense<0xFF800000> : vector<16xf32>
    %65 = vector.multi_reduction <maximumf>, %64, %cst_23 [1] : vector<16x256xf32> to vector<16xf32>
    %66 = vector.shape_cast %65 : vector<16xf32> to vector<16x1xf32>
    %67 = vector.broadcast %66 : vector<16x1xf32> to vector<16x256xf32>
    %68 = arith.subf %64, %67 : vector<16x256xf32>
    %69 = math.exp %68 : vector<16x256xf32>
    %cst_24 = arith.constant dense<0.000000e+00> : vector<16xf32>
    %70 = vector.multi_reduction <add>, %69, %cst_24 [1] : vector<16x256xf32> to vector<16xf32>
    %71 = vector.shape_cast %70 : vector<16xf32> to vector<16x1xf32>
    %72 = tpu.reciprocal %71 {approx = true} : vector<16x1xf32> -> vector<16x1xf32>
    %73 = vector.broadcast %72 : vector<16x1xf32> to vector<16x256xf32>
    %74 = arith.mulf %69, %73 : vector<16x256xf32>
    %75 = vector.extract_strided_slice %16 {offsets = [0, 2], sizes = [16, 1], strides = [1, 1]} : vector<16x4xf32> to vector<16x1xf32>
    %76 = vector.broadcast %75 : vector<16x1xf32> to vector<16x256xf32>
    %77 = arith.mulf %76, %74 : vector<16x256xf32>
    %78 = arith.addf %60, %77 : vector<16x256xf32>
    %79 = vector.extract_strided_slice %23 {offsets = [0, 384], sizes = [16, 128], strides = [1, 1]} : vector<16x512xbf16> to vector<16x128xbf16>
    %cst_25 = arith.constant dense<0.000000e+00> : vector<16x256xf32>
    %80 = tpu.matmul %79, %24, %cst_25 {dimension_numbers = #tpu.dot_dimension_numbers<[1], [0], [0], [1], [0, 0, 1, 1], [], []>} : vector<16x128xbf16>, vector<128x256xbf16>, vector<16x256xf32> -> vector<16x256xf32>
    %81 = vector.broadcast %25 : vector<1x256xf32> to vector<16x256xf32>
    %82 = arith.addf %80, %81 : vector<16x256xf32>
    %cst_26 = arith.constant dense<0xFF800000> : vector<16xf32>
    %83 = vector.multi_reduction <maximumf>, %82, %cst_26 [1] : vector<16x256xf32> to vector<16xf32>
    %84 = vector.shape_cast %83 : vector<16xf32> to vector<16x1xf32>
    %85 = vector.broadcast %84 : vector<16x1xf32> to vector<16x256xf32>
    %86 = arith.subf %82, %85 : vector<16x256xf32>
    %87 = math.exp %86 : vector<16x256xf32>
    %cst_27 = arith.constant dense<0.000000e+00> : vector<16xf32>
    %88 = vector.multi_reduction <add>, %87, %cst_27 [1] : vector<16x256xf32> to vector<16xf32>
    %89 = vector.shape_cast %88 : vector<16xf32> to vector<16x1xf32>
    %90 = tpu.reciprocal %89 {approx = true} : vector<16x1xf32> -> vector<16x1xf32>
    %91 = vector.broadcast %90 : vector<16x1xf32> to vector<16x256xf32>
    %92 = arith.mulf %87, %91 : vector<16x256xf32>
    %93 = vector.extract_strided_slice %16 {offsets = [0, 3], sizes = [16, 1], strides = [1, 1]} : vector<16x4xf32> to vector<16x1xf32>
    %94 = vector.broadcast %93 : vector<16x1xf32> to vector<16x256xf32>
    %95 = arith.mulf %94, %92 : vector<16x256xf32>
    %96 = arith.addf %78, %95 : vector<16x256xf32>
    %97 = math.log %96 : vector<16x256xf32>
    %c0_28 = arith.constant 0 : index
    %c0_29 = arith.constant 0 : index
    %98 = vector.load %arg8[%c0_28, %c0_29] : memref<16x256xf32, #tpu.memory_space<vmem>>, vector<16x256xf32>
    tpu.vector_store %arg8[%c0_28, %c0_29], %97 {strides = array<i32>} : memref<16x256xf32, #tpu.memory_space<vmem>>, vector<16x256xf32>,
    return
  }
  func.func @transform_0(%arg0: i32) -> (i32, i32) {
    %c0_i32 = arith.constant 0 : i32
    %c0_i32_0 = arith.constant 0 : i32
    return %arg0, %c0_i32 : i32, i32
  }
  func.func @transform_1(%arg0: i32) -> (i32, i32) {
    %c0_i32 = arith.constant 0 : i32
    %c0_i32_0 = arith.constant 0 : i32
    %c0_i32_1 = arith.constant 0 : i32
    return %c0_i32, %c0_i32_0 : i32, i32
  }
  func.func @transform_2(%arg0: i32) -> (i32, i32) {
    %c0_i32 = arith.constant 0 : i32
    %c0_i32_0 = arith.constant 0 : i32
    %c0_i32_1 = arith.constant 0 : i32
    return %c0_i32, %c0_i32_0 : i32, i32
  }
  func.func @transform_3(%arg0: i32) -> (i32, i32) {
    %c0_i32 = arith.constant 0 : i32
    %c0_i32_0 = arith.constant 0 : i32
    %c0_i32_1 = arith.constant 0 : i32
    return %c0_i32, %c0_i32_0 : i32, i32
  }
  func.func @transform_4(%arg0: i32) -> (i32, i32) {
    %c0_i32 = arith.constant 0 : i32
    %c0_i32_0 = arith.constant 0 : i32
    %c0_i32_1 = arith.constant 0 : i32
    return %c0_i32, %c0_i32_0 : i32, i32
  }
  func.func @transform_5(%arg0: i32) -> (i32, i32) {
    %c0_i32 = arith.constant 0 : i32
    %c0_i32_0 = arith.constant 0 : i32
    %c0_i32_1 = arith.constant 0 : i32
    return %c0_i32, %c0_i32_0 : i32, i32
  }
  func.func @transform_6(%arg0: i32) -> (i32, i32) {
    %c0_i32 = arith.constant 0 : i32
    %c0_i32_0 = arith.constant 0 : i32
    %c0_i32_1 = arith.constant 0 : i32
    return %c0_i32, %c0_i32_0 : i32, i32
  }
  func.func @transform_7(%arg0: i32) -> (i32, i32) {
    %c0_i32 = arith.constant 0 : i32
    %c0_i32_0 = arith.constant 0 : i32
    return %arg0, %c0_i32 : i32, i32
  }
}

</mosaic_0001>

<llo_original>
// kernel: tpu_custom_call.1
$region0: #{tpu_custom_call.1}
  #allocation0 [shape = 'u32[]', space=smem, size = 0x4, offset = 0x4, fixed_abs, tag = 'smem constant byte address 0x4 - core index']
  #allocation1 [shape = 'u32[144,128]{1,0:T(1,128)}', space=vmem, size = 0x12000, scoped, tag = 'internal scratch']
  %s0 = inlined_call_operand.vmem [shape: f32[16,128], index: 0, kind: input, shape index: {}]
  %s1 = inlined_call_operand.hbm [shape: bf16[128,512], index: 1, kind: input, shape index: {}]
  %s2 = inlined_call_operand.vmem [shape: f32[1,512], index: 2, kind: input, shape index: {}]
  %s3 = inlined_call_operand.vmem [shape: bf16[128,4], index: 3, kind: input, shape index: {}]
  %s4 = inlined_call_operand.vmem [shape: f32[1,4], index: 4, kind: input, shape index: {}]
  %s5 = inlined_call_operand.hbm [shape: bf16[128,256], index: 5, kind: input, shape index: {}]
  %s6 = inlined_call_operand.vmem [shape: f32[1,256], index: 6, kind: input, shape index: {}]
  %s7 = inlined_call_operand.hbm [shape: f32[16,256], index: 7, kind: output, shape index: {}]
  %s8 = sld [smem:[#allocation0]]
  $region46: #{tpu_custom_call.1} parent=0
    _
  %s10 = ssub.s32 1, %s8
  %s11 = scalar_select 0, %s10, %s8
  $region1: #{tpu_custom_call.1} parent=0
    #allocation2 [shape = 'u8[131072]{0}', space=vmem, size = 0x20000, scoped, tag = 'input window, operand 1, single buffered']
    #allocation3 [shape = 's32[1]{0}', space=sflag, size = 0x4, scoped, tag = 'scoped memory for tpu_custom_call.1']
    #allocation4 [shape = 's32[1]{0}', space=sflag, size = 0x4, scoped, tag = 'scoped memory for tpu_custom_call.1']
    #allocation5 [shape = 'u8[65536]{0}', space=vmem, size = 0x10000, scoped, tag = 'input window, operand 5, single buffered']
    #allocation6 [shape = 's32[1]{0}', space=sflag, size = 0x4, scoped, tag = 'scoped memory for tpu_custom_call.1']
    #allocation7 [shape = 'u8[16384]{0}', space=vmem, size = 0x4000, scoped, tag = 'output window, operand 0, single buffered']
    %12 = vsyncpa [#allocation3], 0
    %13 = vsyncpa [#allocation6], 0
    %14 = vsyncpa [#allocation4], 0
    // Predicated region
    $region2: #{tpu_custom_call.1} parent=1 // pred_check
      _
    $region3: #{tpu_custom_call.1} parent=1 // pred_check_branch
      %16 = sbr.rel (0) target = $region5
    $region4: #{tpu_custom_call.1} parent=1 // pred_region
      _
    $region5: #{tpu_custom_call.1} parent=1 // pred_fallthru
      _
    // Predicated region
    $region6: #{tpu_custom_call.1} parent=1 // pred_check
      _
    $region7: #{tpu_custom_call.1} parent=1 // pred_check_branch
      %18 = sbr.rel (0) target = $region9
    $region8: #{tpu_custom_call.1} parent=1 // pred_region
      %s20 = ssub.s32 4096, 4096
      %21 = vsyncadd [#allocation3], %s20
      %s22 = sshll.u32 [#allocation2], 4
      %s23 = int_to_ptr.vmem [resolvable:$true] %s22
      %28 = dma.hbm_to_vmem [thread:$0]  %s1, 4096, %s23, [#allocation3], 256, 256, 16
    $region9: #{tpu_custom_call.1} parent=1 // pred_fallthru
      _
    // Predicated region
    $region10: #{tpu_custom_call.1} parent=1 // pred_check
      _
    $region11: #{tpu_custom_call.1} parent=1 // pred_check_branch
      %30 = sbr.rel (0) target = $region13
    $region12: #{tpu_custom_call.1} parent=1 // pred_region
      _
    $region13: #{tpu_custom_call.1} parent=1 // pred_fallthru
      _
    // Predicated region
    $region14: #{tpu_custom_call.1} parent=1 // pred_check
      _
    $region15: #{tpu_custom_call.1} parent=1 // pred_check_branch
      %32 = sbr.rel (0) target = $region17
    $region16: #{tpu_custom_call.1} parent=1 // pred_region
      _
    $region17: #{tpu_custom_call.1} parent=1 // pred_fallthru
      _
    // Predicated region
    $region18: #{tpu_custom_call.1} parent=1 // pred_check
      _
    $region19: #{tpu_custom_call.1} parent=1 // pred_check_branch
      %34 = sbr.rel (0) target = $region21
    $region20: #{tpu_custom_call.1} parent=1 // pred_region
      _
    $region21: #{tpu_custom_call.1} parent=1 // pred_fallthru
      _
    // Predicated region
    $region22: #{tpu_custom_call.1} parent=1 // pred_check
      _
    $region23: #{tpu_custom_call.1} parent=1 // pred_check_branch
      %36 = sbr.rel (0) target = $region25
    $region24: #{tpu_custom_call.1} parent=1 // pred_region
      %s38 = ssub.s32 2048, 2048
      %39 = vsyncadd [#allocation6], %s38
      %s40 = sshll.u32 [#allocation5], 4
      %s41 = int_to_ptr.vmem [resolvable:$true] %s40
      %46 = dma.hbm_to_vmem [thread:$0]  %s5, 2048, %s41, [#allocation6], 128, 128, 8
    $region25: #{tpu_custom_call.1} parent=1 // pred_fallthru
      _
    // Predicated region
    $region26: #{tpu_custom_call.1} parent=1 // pred_check
      _
    $region27: #{tpu_custom_call.1} parent=1 // pred_check_branch
      %48 = sbr.rel (0) target = $region29
    $region28: #{tpu_custom_call.1} parent=1 // pred_region
      _
    $region29: #{tpu_custom_call.1} parent=1 // pred_fallthru
      _
    // Predicated region
    $region30: #{tpu_custom_call.1} parent=1 // pred_check
      _
    $region31: #{tpu_custom_call.1} parent=1 // pred_check_branch
      %50 = sbr.rel (0) target = $region33
    $region32: #{tpu_custom_call.1} parent=1 // pred_region
      %51 = dma.done [#allocation3], 4096
    $region33: #{tpu_custom_call.1} parent=1 // pred_fallthru
      _
    // Predicated region
    $region34: #{tpu_custom_call.1} parent=1 // pred_check
      _
    $region35: #{tpu_custom_call.1} parent=1 // pred_check_branch
      %53 = sbr.rel (0) target = $region37
    $region36: #{tpu_custom_call.1} parent=1 // pred_region
      %54 = dma.done [#allocation6], 2048
    $region37: #{tpu_custom_call.1} parent=1 // pred_fallthru
      _
    %v56 = vld [vmem:[%s0] sm:$0xff]
    %v57 = vld [vmem:[%s0 + $0x8] sm:$0xff]
    %v58 = vpack.c.bf16 %v57, %v56
    %v59 = vld [vmem:[%s3] sm:$0xf]
    %v60 = vld [vmem:[%s3 + $0x4] sm:$0xf]
    %v61 = vld [vmem:[%s3 + $0x8] sm:$0xf]
    %v62 = vld [vmem:[%s3 + $0xc] sm:$0xf]
    %v63 = vld [vmem:[%s3 + $0x10] sm:$0xf]
    %v64 = vld [vmem:[%s3 + $0x14] sm:$0xf]
    %v65 = vld [vmem:[%s3 + $0x18] sm:$0xf]
    %v66 = vld [vmem:[%s3 + $0x1c] sm:$0xf]
    %v67 = vld [vmem:[%s3 + $0x20] sm:$0xf]
    %v68 = vld [vmem:[%s3 + $0x24] sm:$0xf]
    %v69 = vld [vmem:[%s3 + $0x28] sm:$0xf]
    %v70 = vld [vmem:[%s3 + $0x2c] sm:$0xf]
    %v71 = vld [vmem:[%s3 + $0x30] sm:$0xf]
    %v72 = vld [vmem:[%s3 + $0x34] sm:$0xf]
    %v73 = vld [vmem:[%s3 + $0x38] sm:$0xf]
    %v74 = vld [vmem:[%s3 + $0x3c] sm:$0xf]
    %v75 = vld [vmem:[%s4] sm:$0x1]
    %v77 = vlaneseq
    %v78 = vshrl.u32 %v77, 7
    %v79 = vsub.s32 0, %v78
    %v80 = vrot.slane %v75, %v79
    %v98 = vunpack.c.l.b16 %v59
    %v99 = vunpack.c.l.b16 %v60
    %v100 = vunpack.c.l.b16 %v61
    %v101 = vunpack.c.l.b16 %v62
    %v102 = vunpack.c.l.b16 %v63
    %v103 = vunpack.c.l.b16 %v64
    %v104 = vunpack.c.l.b16 %v65
    %v105 = vunpack.c.l.b16 %v66
    %v106 = vunpack.c.l.b16 %v67
    %v107 = vunpack.c.l.b16 %v68
    %v108 = vunpack.c.l.b16 %v69
    %v109 = vunpack.c.l.b16 %v70
    %v110 = vunpack.c.l.b16 %v71
    %v111 = vunpack.c.l.b16 %v72
    %v112 = vunpack.c.l.b16 %v73
    %v113 = vunpack.c.l.b16 %v74
    %v114 = vpack.c.b16 %v99, %v98
    %v115 = vpack.c.b16 %v101, %v100
    %v116 = vpack.c.b16 %v103, %v102
    %v117 = vpack.c.b16 %v105, %v104
    %v118 = vpack.c.b16 %v107, %v106
    %v119 = vpack.c.b16 %v109, %v108
    %v120 = vpack.c.b16 %v111, %v110
    %v121 = vpack.c.b16 %v113, %v112
    %130 = vmatprep.subr.bf16.mxu0 0
    %131 = vmatpush1.bf16.msra.mxu0 %v114
    %132 = vmatprep.subr.bf16.mxu0 0
    %133 = vmatpush1.bf16.msra.mxu0 %v115
    %134 = vmatprep.subr.bf16.mxu0 0
    %135 = vmatpush1.bf16.msra.mxu0 %v116
    %136 = vmatprep.subr.bf16.mxu0 0
    %137 = vmatpush1.bf16.msra.mxu0 %v117
    %138 = vmatprep.subr.bf16.mxu0 0
    %139 = vmatpush1.bf16.msra.mxu0 %v118
    %140 = vmatprep.subr.bf16.mxu0 0
    %141 = vmatpush1.bf16.msra.mxu0 %v119
    %142 = vmatprep.subr.bf16.mxu0 0
    %143 = vmatpush1.bf16.msra.mxu0 %v120
    %144 = vmatprep.subr.bf16.mxu0 0
    %145 = vmatpush1.bf16.msra.mxu0 %v121
    %146 = vmatprep.subr.bf16.mxu0 0
    %147 = vmatpush1.bf16.msra.mxu0 0
    %148 = vmatprep.subr.bf16.mxu0 0
    %149 = vmatpush1.bf16.msra.mxu0 0
    %150 = vmatprep.subr.bf16.mxu0 0
    %151 = vmatpush1.bf16.msra.mxu0 0
    %152 = vmatprep.subr.bf16.mxu0 0
    %153 = vmatpush1.bf16.msra.mxu0 0
    %154 = vmatprep.subr.bf16.mxu0 0
    %155 = vmatpush1.bf16.msra.mxu0 0
    %156 = vmatprep.subr.bf16.mxu0 0
    %157 = vmatpush1.bf16.msra.mxu0 0
    %158 = vmatprep.subr.bf16.mxu0 0
    %159 = vmatpush1.bf16.msra.mxu0 0
    %160 = vmatprep.subr.bf16.mxu0 0
    %161 = vmatpush1.bf16.msra.mxu0 0
    %162 = vmatprep.mubr.bf16.mxu0 0
    %163 = vmatmul.mubr.bf16.gmra.mrb[0].mxu0 %v58
    %v164 = vpop.f32.mrb[0].mxu0
    %v165 = vadd.f32 %v80, %v164
    %v166 = vpop.f32.mrb[0].mxu0
    %v167 = vpop.f32.mrb[0].mxu0
    %v168 = vadd.f32 %v80, %v167
    %v169 = vpop.f32.mrb[0].mxu0
    %170 = vdwg.mxu0
    %vm171 = vcmask 31744
    %v172 = vsel %vm171, %v165, -inf
    %173 = vmax.xlane.f32.xlu0 %v172
    %v174 = vpop.xlane.xlu0 %173
    %v175 = vsel %vm171, %v168, -inf
    %176 = vmax.xlane.f32.xlu0 %v175
    %v177 = vpop.xlane.xlu0 %176
    %v178 = vsub.f32 %v165, %v174
    %v179 = vsub.f32 %v168, %v177
    %v180 = vmul.f32 %v178, 1.442695
    %v181 = vpow.pop %v180
    %v182 = vmul.f32 %v179, 1.442695
    %v183 = vpow.pop %v182
    %v184 = vsel %vm171, %v181, 0.0
    %185 = vadd.xlane.f32.xlu0 %v184
    %v186 = vpop.xlane.xlu0 %185
    %v187 = vsel %vm171, %v183, 0.0
    %188 = vadd.xlane.f32.xlu0 %v187
    %v189 = vpop.xlane.xlu0 %188
    %v190 = vrcp.pop %v186
    %v191 = vrcp.pop %v189
    %v192 = vmul.f32 %v181, %v190
    %v193 = vmul.f32 %v183, %v191
    %v194 = vld [vmem:[#allocation2] sm:$0xff]
    %v195 = vld [vmem:[#allocation2 + $0x8] sm:$0xff]
    %v196 = vld [vmem:[#allocation2 + $0x10] sm:$0xff]
    %v197 = vld [vmem:[#allocation2 + $0x18] sm:$0xff]
    %v198 = vld [vmem:[#allocation2 + $0x20] sm:$0xff]
    %v199 = vld [vmem:[#allocation2 + $0x28] sm:$0xff]
    %v200 = vld [vmem:[#allocation2 + $0x30] sm:$0xff]
    %v201 = vld [vmem:[#allocation2 + $0x38] sm:$0xff]
    %v202 = vld [vmem:[#allocation2 + $0x40] sm:$0xff]
    %v203 = vld [vmem:[#allocation2 + $0x48] sm:$0xff]
    %v204 = vld [vmem:[#allocation2 + $0x50] sm:$0xff]
    %v205 = vld [vmem:[#allocation2 + $0x58] sm:$0xff]
    %v206 = vld [vmem:[#allocation2 + $0x60] sm:$0xff]
    %v207 = vld [vmem:[#allocation2 + $0x68] sm:$0xff]
    %v208 = vld [vmem:[#allocation2 + $0x70] sm:$0xff]
    %v209 = vld [vmem:[#allocation2 + $0x78] sm:$0xff]
    %v210 = vld [vmem:[#allocation2 + $0x80] sm:$0xff]
    %v211 = vld [vmem:[#allocation2 + $0x88] sm:$0xff]
    %v212 = vld [vmem:[#allocation2 + $0x90] sm:$0xff]
    %v213 = vld [vmem:[#allocation2 + $0x98] sm:$0xff]
    %v214 = vld [vmem:[#allocation2 + $0xa0] sm:$0xff]
    %v215 = vld [vmem:[#allocation2 + $0xa8] sm:$0xff]
    %v216 = vld [vmem:[#allocation2 + $0xb0] sm:$0xff]
    %v217 = vld [vmem:[#allocation2 + $0xb8] sm:$0xff]
    %v218 = vld [vmem:[#allocation2 + $0xc0] sm:$0xff]
    %v219 = vld [vmem:[#allocation2 + $0xc8] sm:$0xff]
    %v220 = vld [vmem:[#allocation2 + $0xd0] sm:$0xff]
    %v221 = vld [vmem:[#allocation2 + $0xd8] sm:$0xff]
    %v222 = vld [vmem:[#allocation2 + $0xe0] sm:$0xff]
    %v223 = vld [vmem:[#allocation2 + $0xe8] sm:$0xff]
    %v224 = vld [vmem:[#allocation2 + $0xf0] sm:$0xff]
    %v225 = vld [vmem:[#allocation2 + $0xf8] sm:$0xff]
    %v226 = vld [vmem:[%s2] sm:$0xf]
    %v228 = vlaneseq
    %v229 = vshrl.u32 %v228, 7
    %v230 = vsub.s32 0, %v229
    %v231 = vrot.slane %v226, %v230
    %v232 = vlaneseq
    %v233 = vshrl.u32 %v232, 7
    %v234 = vsub.s32 1, %v233
    %v235 = vrot.slane %v226, %v234
    %v236 = vlaneseq
    %v237 = vshrl.u32 %v236, 7
    %v238 = vsub.s32 2, %v237
    %v239 = vrot.slane %v226, %v238
    %v240 = vlaneseq
    %v241 = vshrl.u32 %v240, 7
    %v242 = vsub.s32 3, %v241
    %v243 = vrot.slane %v226, %v242
    %v280 = vunpack.c.l.b16 %v194
    %v281 = vunpack.c.h.b16 %v194
    %v282 = vunpack.c.l.b16 %v195
    %v283 = vunpack.c.h.b16 %v195
    %v284 = vunpack.c.l.b16 %v196
    %v285 = vunpack.c.h.b16 %v196
    %v286 = vunpack.c.l.b16 %v197
    %v287 = vunpack.c.h.b16 %v197
    %v288 = vunpack.c.l.b16 %v198
    %v289 = vunpack.c.h.b16 %v198
    %v290 = vunpack.c.l.b16 %v199
    %v291 = vunpack.c.h.b16 %v199
    %v292 = vunpack.c.l.b16 %v200
    %v293 = vunpack.c.h.b16 %v200
    %v294 = vunpack.c.l.b16 %v201
    %v295 = vunpack.c.h.b16 %v201
    %v296 = vunpack.c.l.b16 %v202
    %v297 = vunpack.c.h.b16 %v202
    %v298 = vunpack.c.l.b16 %v203
    %v299 = vunpack.c.h.b16 %v203
    %v300 = vunpack.c.l.b16 %v204
    %v301 = vunpack.c.h.b16 %v204
    %v302 = vunpack.c.l.b16 %v205
    %v303 = vunpack.c.h.b16 %v205
    %v304 = vunpack.c.l.b16 %v206
    %v305 = vunpack.c.h.b16 %v206
    %v306 = vunpack.c.l.b16 %v207
    %v307 = vunpack.c.h.b16 %v207
    %v308 = vunpack.c.l.b16 %v208
    %v309 = vunpack.c.h.b16 %v208
    %v310 = vunpack.c.l.b16 %v209
    %v311 = vunpack.c.h.b16 %v209
    %v312 = vunpack.c.l.b16 %v210
    %v313 = vunpack.c.h.b16 %v210
    %v314 = vunpack.c.l.b16 %v211
    %v315 = vunpack.c.h.b16 %v211
    %v316 = vunpack.c.l.b16 %v212
    %v317 = vunpack.c.h.b16 %v212
    %v318 = vunpack.c.l.b16 %v213
    %v319 = vunpack.c.h.b16 %v213
    %v320 = vunpack.c.l.b16 %v214
    %v321 = vunpack.c.h.b16 %v214
    %v322 = vunpack.c.l.b16 %v215
    %v323 = vunpack.c.h.b16 %v215
    %v324 = vunpack.c.l.b16 %v216
    %v325 = vunpack.c.h.b16 %v216
    %v326 = vunpack.c.l.b16 %v217
    %v327 = vunpack.c.h.b16 %v217
    %v328 = vunpack.c.l.b16 %v218
    %v329 = vunpack.c.h.b16 %v218
    %v330 = vunpack.c.l.b16 %v219
    %v331 = vunpack.c.h.b16 %v219
    %v332 = vunpack.c.l.b16 %v220
    %v333 = vunpack.c.h.b16 %v220
    %v334 = vunpack.c.l.b16 %v221
    %v335 = vunpack.c.h.b16 %v221
    %v336 = vunpack.c.l.b16 %v222
    %v337 = vunpack.c.h.b16 %v222
    %v338 = vunpack.c.l.b16 %v223
    %v339 = vunpack.c.h.b16 %v223
    %v340 = vunpack.c.l.b16 %v224
    %v341 = vunpack.c.h.b16 %v224
    %v342 = vunpack.c.l.b16 %v225
    %v343 = vunpack.c.h.b16 %v225
    %v344 = vpack.c.b16 %v284, %v280
    %v345 = vpack.c.b16 %v285, %v281
    %v346 = vpack.c.b16 %v286, %v282
    %v347 = vpack.c.b16 %v287, %v283
    %v348 = vpack.c.b16 %v292, %v288
    %v349 = vpack.c.b16 %v293, %v289
    %v350 = vpack.c.b16 %v294, %v290
    %v351 = vpack.c.b16 %v295, %v291
    %v352 = vpack.c.b16 %v300, %v296
    %v353 = vpack.c.b16 %v301, %v297
    %v354 = vpack.c.b16 %v302, %v298
    %v355 = vpack.c.b16 %v303, %v299
    %v356 = vpack.c.b16 %v308, %v304
    %v357 = vpack.c.b16 %v309, %v305
    %v358 = vpack.c.b16 %v310, %v306
    %v359 = vpack.c.b16 %v311, %v307
    %v360 = vpack.c.b16 %v316, %v312
    %v361 = vpack.c.b16 %v317, %v313
    %v362 = vpack.c.b16 %v318, %v314
    %v363 = vpack.c.b16 %v319, %v315
    %v364 = vpack.c.b16 %v324, %v320
    %v365 = vpack.c.b16 %v325, %v321
    %v366 = vpack.c.b16 %v326, %v322
    %v367 = vpack.c.b16 %v327, %v323
    %v368 = vpack.c.b16 %v332, %v328
    %v369 = vpack.c.b16 %v333, %v329
    %v370 = vpack.c.b16 %v334, %v330
    %v371 = vpack.c.b16 %v335, %v331
    %v372 = vpack.c.b16 %v340, %v336
    %v373 = vpack.c.b16 %v341, %v337
    %v374 = vpack.c.b16 %v342, %v338
    %v375 = vpack.c.b16 %v343, %v339
    %408 = vmatprep.subr.bf16.mxu0 %v345
    %409 = vmatpush1.bf16.msra.mxu0 %v344
    %410 = vmatprep.subr.bf16.mxu0 %v349
    %411 = vmatpush1.bf16.msra.mxu0 %v348
    %412 = vmatprep.subr.bf16.mxu0 %v353
    %413 = vmatpush1.bf16.msra.mxu0 %v352
    %414 = vmatprep.subr.bf16.mxu0 %v357
    %415 = vmatpush1.bf16.msra.mxu0 %v356
    %416 = vmatprep.subr.bf16.mxu0 %v361
    %417 = vmatpush1.bf16.msra.mxu0 %v360
    %418 = vmatprep.subr.bf16.mxu0 %v365
    %419 = vmatpush1.bf16.msra.mxu0 %v364
    %420 = vmatprep.subr.bf16.mxu0 %v369
    %421 = vmatpush1.bf16.msra.mxu0 %v368
    %422 = vmatprep.subr.bf16.mxu0 %v373
    %423 = vmatpush1.bf16.msra.mxu0 %v372
    %424 = vmatprep.subr.bf16.mxu0 0
    %425 = vmatpush1.bf16.msra.mxu0 0
    %426 = vmatprep.subr.bf16.mxu0 0
    %427 = vmatpush1.bf16.msra.mxu0 0
    %428 = vmatprep.subr.bf16.mxu0 0
    %429 = vmatpush1.bf16.msra.mxu0 0
    %430 = vmatprep.subr.bf16.mxu0 0
    %431 = vmatpush1.bf16.msra.mxu0 0
    %432 = vmatprep.subr.bf16.mxu0 0
    %433 = vmatpush1.bf16.msra.mxu0 0
    %434 = vmatprep.subr.bf16.mxu0 0
    %435 = vmatpush1.bf16.msra.mxu0 0
    %436 = vmatprep.subr.bf16.mxu0 0
    %437 = vmatpush1.bf16.msra.mxu0 0
    %438 = vmatprep.subr.bf16.mxu0 0
    %439 = vmatpush1.bf16.msra.mxu0 0
    %440 = vmatprep.mubr.bf16.mxu0 0
    %441 = vmatmul.mubr.bf16.gmra.mrb[0].mxu0 %v58
    %v442 = vpop.f32.mrb[0].mxu0
    %v443 = vadd.f32 %v231, %v442
    %v444 = vpop.f32.mrb[0].mxu0
    %v445 = vadd.f32 %v235, %v444
    %v446 = vpop.f32.mrb[0].mxu0
    %v447 = vadd.f32 %v231, %v446
    %v448 = vpop.f32.mrb[0].mxu0
    %v449 = vadd.f32 %v235, %v448
    %450 = vdwg.mxu0
    %451 = vmatprep.subr.bf16.mxu0 %v347
    %452 = vmatpush1.bf16.msra.mxu0 %v346
    %453 = vmatprep.subr.bf16.mxu0 %v351
    %454 = vmatpush1.bf16.msra.mxu0 %v350
    %455 = vmatprep.subr.bf16.mxu0 %v355
    %456 = vmatpush1.bf16.msra.mxu0 %v354
    %457 = vmatprep.subr.bf16.mxu0 %v359
    %458 = vmatpush1.bf16.msra.mxu0 %v358
    %459 = vmatprep.subr.bf16.mxu0 %v363
    %460 = vmatpush1.bf16.msra.mxu0 %v362
    %461 = vmatprep.subr.bf16.mxu0 %v367
    %462 = vmatpush1.bf16.msra.mxu0 %v366
    %463 = vmatprep.subr.bf16.mxu0 %v371
    %464 = vmatpush1.bf16.msra.mxu0 %v370
    %465 = vmatprep.subr.bf16.mxu0 %v375
    %466 = vmatpush1.bf16.msra.mxu0 %v374
    %467 = vmatprep.subr.bf16.mxu0 0
    %468 = vmatpush1.bf16.msra.mxu0 0
    %469 = vmatprep.subr.bf16.mxu0 0
    %470 = vmatpush1.bf16.msra.mxu0 0
    %471 = vmatprep.subr.bf16.mxu0 0
    %472 = vmatpush1.bf16.msra.mxu0 0
    %473 = vmatprep.subr.bf16.mxu0 0
    %474 = vmatpush1.bf16.msra.mxu0 0
    %475 = vmatprep.subr.bf16.mxu0 0
    %476 = vmatpush1.bf16.msra.mxu0 0
    %477 = vmatprep.subr.bf16.mxu0 0
    %478 = vmatpush1.bf16.msra.mxu0 0
    %479 = vmatprep.subr.bf16.mxu0 0
    %480 = vmatpush1.bf16.msra.mxu0 0
    %481 = vmatprep.subr.bf16.mxu0 0
    %482 = vmatpush1.bf16.msra.mxu0 0
    %483 = vmatprep.mubr.bf16.mxu0 0
    %484 = vmatmul.mubr.bf16.gmra.mrb[0].mxu0 %v58
    %v485 = vpop.f32.mrb[0].mxu0
    %v486 = vadd.f32 %v239, %v485
    %v487 = vpop.f32.mrb[0].mxu0
    %v488 = vadd.f32 %v243, %v487
    %v489 = vpop.f32.mrb[0].mxu0
    %v490 = vadd.f32 %v239, %v489
    %v491 = vpop.f32.mrb[0].mxu0
    %v492 = vadd.f32 %v243, %v491
    %493 = vdwg.mxu0
    %v494 = vtanh.pop %v443
    %v495 = vtanh.pop %v445
    %v496 = vtanh.pop %v486
    %v497 = vtanh.pop %v488
    %v498 = vtanh.pop %v447
    %v499 = vtanh.pop %v449
    %v500 = vtanh.pop %v490
    %v501 = vtanh.pop %v492
    %v502 = vpack.c.bf16 %v498, %v494
    %v503 = vpack.c.bf16 %v499, %v495
    %v504 = vpack.c.bf16 %v500, %v496
    %v505 = vpack.c.bf16 %v501, %v497
    %v506 = vld [vmem:[#allocation5] sm:$0xff]
    %v507 = vld [vmem:[#allocation5 + $0x8] sm:$0xff]
    %v508 = vld [vmem:[#allocation5 + $0x10] sm:$0xff]
    %v509 = vld [vmem:[#allocation5 + $0x18] sm:$0xff]
    %v510 = vld [vmem:[#allocation5 + $0x20] sm:$0xff]
    %v511 = vld [vmem:[#allocation5 + $0x28] sm:$0xff]
    %v512 = vld [vmem:[#allocation5 + $0x30] sm:$0xff]
    %v513 = vld [vmem:[#allocation5 + $0x38] sm:$0xff]
    %v514 = vld [vmem:[#allocation5 + $0x40] sm:$0xff]
    %v515 = vld [vmem:[#allocation5 + $0x48] sm:$0xff]
    %v516 = vld [vmem:[#allocation5 + $0x50] sm:$0xff]
    %v517 = vld [vmem:[#allocation5 + $0x58] sm:$0xff]
    %v518 = vld [vmem:[#allocation5 + $0x60] sm:$0xff]
    %v519 = vld [vmem:[#allocation5 + $0x68] sm:$0xff]
    %v520 = vld [vmem:[#allocation5 + $0x70] sm:$0xff]
    %v521 = vld [vmem:[#allocation5 + $0x78] sm:$0xff]
    %v522 = vld [vmem:[%s6] sm:$0x3]
    %v524 = vlaneseq
    %v525 = vshrl.u32 %v524, 7
    %v526 = vsub.s32 0, %v525
    %v527 = vrot.slane %v522, %v526
    %v528 = vlaneseq
    %v529 = vshrl.u32 %v528, 7
    %v530 = vsub.s32 1, %v529
    %v531 = vrot.slane %v522, %v530
    %v550 = vunpack.c.l.b16 %v506
    %v551 = vunpack.c.h.b16 %v506
    %v552 = vunpack.c.l.b16 %v507
    %v553 = vunpack.c.h.b16 %v507
    %v554 = vunpack.c.l.b16 %v508
    %v555 = vunpack.c.h.b16 %v508
    %v556 = vunpack.c.l.b16 %v509
    %v557 = vunpack.c.h.b16 %v509
    %v558 = vunpack.c.l.b16 %v510
    %v559 = vunpack.c.h.b16 %v510
    %v560 = vunpack.c.l.b16 %v511
    %v561 = vunpack.c.h.b16 %v511
    %v562 = vunpack.c.l.b16 %v512
    %v563 = vunpack.c.h.b16 %v512
    %v564 = vunpack.c.l.b16 %v513
    %v565 = vunpack.c.h.b16 %v513
    %v566 = vunpack.c.l.b16 %v514
    %v567 = vunpack.c.h.b16 %v514
    %v568 = vunpack.c.l.b16 %v515
    %v569 = vunpack.c.h.b16 %v515
    %v570 = vunpack.c.l.b16 %v516
    %v571 = vunpack.c.h.b16 %v516
    %v572 = vunpack.c.l.b16 %v517
    %v573 = vunpack.c.h.b16 %v517
    %v574 = vunpack.c.l.b16 %v518
    %v575 = vunpack.c.h.b16 %v518
    %v576 = vunpack.c.l.b16 %v519
    %v577 = vunpack.c.h.b16 %v519
    %v578 = vunpack.c.l.b16 %v520
    %v579 = vunpack.c.h.b16 %v520
    %v580 = vunpack.c.l.b16 %v521
    %v581 = vunpack.c.h.b16 %v521
    %v582 = vpack.c.b16 %v552, %v550
    %v583 = vpack.c.b16 %v553, %v551
    %v584 = vpack.c.b16 %v556, %v554
    %v585 = vpack.c.b16 %v557, %v555
    %v586 = vpack.c.b16 %v560, %v558
    %v587 = vpack.c.b16 %v561, %v559
    %v588 = vpack.c.b16 %v564, %v562
    %v589 = vpack.c.b16 %v565, %v563
    %v590 = vpack.c.b16 %v568, %v566
    %v591 = vpack.c.b16 %v569, %v567
    %v592 = vpack.c.b16 %v572, %v570
    %v593 = vpack.c.b16 %v573, %v571
    %v594 = vpack.c.b16 %v576, %v574
    %v595 = vpack.c.b16 %v577, %v575
    %v596 = vpack.c.b16 %v580, %v578
    %v597 = vpack.c.b16 %v581, %v579
    %614 = vmatprep.subr.bf16.mxu0 %v583
    %615 = vmatpush1.bf16.msra.mxu0 %v582
    %616 = vmatprep.subr.bf16.mxu0 %v585
    %617 = vmatpush1.bf16.msra.mxu0 %v584
    %618 = vmatprep.subr.bf16.mxu0 %v587
    %619 = vmatpush1.bf16.msra.mxu0 %v586
    %620 = vmatprep.subr.bf16.mxu0 %v589
    %621 = vmatpush1.bf16.msra.mxu0 %v588
    %622 = vmatprep.subr.bf16.mxu0 %v591
    %623 = vmatpush1.bf16.msra.mxu0 %v590
    %624 = vmatprep.subr.bf16.mxu0 %v593
    %625 = vmatpush1.bf16.msra.mxu0 %v592
    %626 = vmatprep.subr.bf16.mxu0 %v595
    %627 = vmatpush1.bf16.msra.mxu0 %v594
    %628 = vmatprep.subr.bf16.mxu0 %v597
    %629 = vmatpush1.bf16.msra.mxu0 %v596
    %630 = vmatprep.subr.bf16.mxu0 0
    %631 = vmatpush1.bf16.msra.mxu0 0
    %632 = vmatprep.subr.bf16.mxu0 0
    %633 = vmatpush1.bf16.msra.mxu0 0
    %634 = vmatprep.subr.bf16.mxu0 0
    %635 = vmatpush1.bf16.msra.mxu0 0
    %636 = vmatprep.subr.bf16.mxu0 0
    %637 = vmatpush1.bf16.msra.mxu0 0
    %638 = vmatprep.subr.bf16.mxu0 0
    %639 = vmatpush1.bf16.msra.mxu0 0
    %640 = vmatprep.subr.bf16.mxu0 0
    %641 = vmatpush1.bf16.msra.mxu0 0
    %642 = vmatprep.subr.bf16.mxu0 0
    %643 = vmatpush1.bf16.msra.mxu0 0
    %644 = vmatprep.subr.bf16.mxu0 0
    %645 = vmatpush1.bf16.msra.mxu0 0
    %646 = vmatprep.mubr.bf16.mxu0 0
    %647 = vmatmul.mubr.bf16.gmra.mrb[0].mxu0 %v502
    %v648 = vpop.f32.mrb[0].mxu0
    %v649 = vadd.f32 %v527, %v648
    %v650 = vpop.f32.mrb[0].mxu0
    %v651 = vadd.f32 %v531, %v650
    %v652 = vpop.f32.mrb[0].mxu0
    %v653 = vadd.f32 %v527, %v652
    %v654 = vpop.f32.mrb[0].mxu0
    %v655 = vadd.f32 %v531, %v654
    %656 = vdwg.mxu0
    %v657 = vmax.f32 %v649, %v651
    %658 = vmax.xlane.f32.xlu0 %v657
    %v659 = vpop.xlane.xlu0 %658
    %v660 = vmax.f32 %v653, %v655
    %661 = vmax.xlane.f32.xlu0 %v660
    %v662 = vpop.xlane.xlu0 %661
    %v663 = vsub.f32 %v649, %v659
    %v664 = vsub.f32 %v651, %v659
    %v665 = vsub.f32 %v653, %v662
    %v666 = vsub.f32 %v655, %v662
    %v667 = vmul.f32 %v663, 1.442695
    %v668 = vpow.pop %v667
    %v669 = vmul.f32 %v664, 1.442695
    %v670 = vpow.pop %v669
    %v671 = vmul.f32 %v665, 1.442695
    %v672 = vpow.pop %v671
    %v673 = vmul.f32 %v666, 1.442695
    %v674 = vpow.pop %v673
    %v675 = vadd.f32 %v668, %v670
    %676 = vadd.xlane.f32.xlu0 %v675
    %v677 = vpop.xlane.xlu0 %676
    %v678 = vadd.f32 %v672, %v674
    %679 = vadd.xlane.f32.xlu0 %v678
    %v680 = vpop.xlane.xlu0 %679
    %v681 = vrcp.pop %v677
    %v682 = vrcp.pop %v680
    %v683 = vmul.f32 %v668, %v681
    %v684 = vmul.f32 %v670, %v681
    %v685 = vmul.f32 %v672, %v682
    %v686 = vmul.f32 %v674, %v682
    %688 = vset.pattern.permute.xlu0 0
    %689 = vperm.xlu0 %688, %v192
    %v690 = vpop.permute.xlu0 %689
    %693 = vset.pattern.permute.xlu0 0
    %694 = vperm.xlu0 %693, %v193
    %v695 = vpop.permute.xlu0 %694
    %v697 = vmul.f32 %v690, %v683
    %v698 = vmul.f32 %v690, %v684
    %v699 = vmul.f32 %v695, %v685
    %v700 = vmul.f32 %v695, %v686
    %701 = vmatprep.subr.bf16.mxu0 %v583
    %702 = vmatpush1.bf16.msra.mxu0 %v582
    %703 = vmatprep.subr.bf16.mxu0 %v585
    %704 = vmatpush1.bf16.msra.mxu0 %v584
    %705 = vmatprep.subr.bf16.mxu0 %v587
    %706 = vmatpush1.bf16.msra.mxu0 %v586
    %707 = vmatprep.subr.bf16.mxu0 %v589
    %708 = vmatpush1.bf16.msra.mxu0 %v588
    %709 = vmatprep.subr.bf16.mxu0 %v591
    %710 = vmatpush1.bf16.msra.mxu0 %v590
    %711 = vmatprep.subr.bf16.mxu0 %v593
    %712 = vmatpush1.bf16.msra.mxu0 %v592
    %713 = vmatprep.subr.bf16.mxu0 %v595
    %714 = vmatpush1.bf16.msra.mxu0 %v594
    %715 = vmatprep.subr.bf16.mxu0 %v597
    %716 = vmatpush1.bf16.msra.mxu0 %v596
    %717 = vmatprep.subr.bf16.mxu0 0
    %718 = vmatpush1.bf16.msra.mxu0 0
    %719 = vmatprep.subr.bf16.mxu0 0
    %720 = vmatpush1.bf16.msra.mxu0 0
    %721 = vmatprep.subr.bf16.mxu0 0
    %722 = vmatpush1.bf16.msra.mxu0 0
    %723 = vmatprep.subr.bf16.mxu0 0
    %724 = vmatpush1.bf16.msra.mxu0 0
    %725 = vmatprep.subr.bf16.mxu0 0
    %726 = vmatpush1.bf16.msra.mxu0 0
    %727 = vmatprep.subr.bf16.mxu0 0
    %728 = vmatpush1.bf16.msra.mxu0 0
    %729 = vmatprep.subr.bf16.mxu0 0
    %730 = vmatpush1.bf16.msra.mxu0 0
    %731 = vmatprep.subr.bf16.mxu0 0
    %732 = vmatpush1.bf16.msra.mxu0 0
    %733 = vmatprep.mubr.bf16.mxu0 0
    %734 = vmatmul.mubr.bf16.gmra.mrb[0].mxu0 %v503
    %v735 = vpop.f32.mrb[0].mxu0
    %v736 = vadd.f32 %v527, %v735
    %v737 = vpop.f32.mrb[0].mxu0
    %v738 = vadd.f32 %v531, %v737
    %v739 = vpop.f32.mrb[0].mxu0
    %v740 = vadd.f32 %v527, %v739
    %v741 = vpop.f32.mrb[0].mxu0
    %v742 = vadd.f32 %v531, %v741
    %743 = vdwg.mxu0
    %v744 = vmax.f32 %v736, %v738
    %745 = vmax.xlane.f32.xlu0 %v744
    %v746 = vpop.xlane.xlu0 %745
    %v747 = vmax.f32 %v740, %v742
    %748 = vmax.xlane.f32.xlu0 %v747
    %v749 = vpop.xlane.xlu0 %748
    %v750 = vsub.f32 %v736, %v746
    %v751 = vsub.f32 %v738, %v746
    %v752 = vsub.f32 %v740, %v749
    %v753 = vsub.f32 %v742, %v749
    %v754 = vmul.f32 %v750, 1.442695
    %v755 = vpow.pop %v754
    %v756 = vmul.f32 %v751, 1.442695
    %v757 = vpow.pop %v756
    %v758 = vmul.f32 %v752, 1.442695
    %v759 = vpow.pop %v758
    %v760 = vmul.f32 %v753, 1.442695
    %v761 = vpow.pop %v760
    %v762 = vadd.f32 %v755, %v757
    %763 = vadd.xlane.f32.xlu0 %v762
    %v764 = vpop.xlane.xlu0 %763
    %v765 = vadd.f32 %v759, %v761
    %766 = vadd.xlane.f32.xlu0 %v765
    %v767 = vpop.xlane.xlu0 %766
    %v768 = vrcp.pop %v764
    %v769 = vrcp.pop %v767
    %v770 = vmul.f32 %v755, %v768
    %v771 = vmul.f32 %v757, %v768
    %v772 = vmul.f32 %v759, %v769
    %v773 = vmul.f32 %v761, %v769
    %774 = vset.pattern.permute.xlu0 1
    %775 = vperm.xlu0 %774, %v192
    %v776 = vpop.permute.xlu0 %775
    %778 = vset.pattern.permute.xlu0 1
    %779 = vperm.xlu0 %778, %v193
    %v780 = vpop.permute.xlu0 %779
    %v782 = vmul.f32 %v776, %v770
    %v783 = vmul.f32 %v776, %v771
    %v784 = vmul.f32 %v780, %v772
    %v785 = vmul.f32 %v780, %v773
    %v786 = vadd.f32 %v697, %v782
    %v787 = vadd.f32 %v698, %v783
    %v788 = vadd.f32 %v699, %v784
    %v789 = vadd.f32 %v700, %v785
    %790 = vmatprep.subr.bf16.mxu0 %v583
    %791 = vmatpush1.bf16.msra.mxu0 %v582
    %792 = vmatprep.subr.bf16.mxu0 %v585
    %793 = vmatpush1.bf16.msra.mxu0 %v584
    %794 = vmatprep.subr.bf16.mxu0 %v587
    %795 = vmatpush1.bf16.msra.mxu0 %v586
    %796 = vmatprep.subr.bf16.mxu0 %v589
    %797 = vmatpush1.bf16.msra.mxu0 %v588
    %798 = vmatprep.subr.bf16.mxu0 %v591
    %799 = vmatpush1.bf16.msra.mxu0 %v590
    %800 = vmatprep.subr.bf16.mxu0 %v593
    %801 = vmatpush1.bf16.msra.mxu0 %v592
    %802 = vmatprep.subr.bf16.mxu0 %v595
    %803 = vmatpush1.bf16.msra.mxu0 %v594
    %804 = vmatprep.subr.bf16.mxu0 %v597
    %805 = vmatpush1.bf16.msra.mxu0 %v596
    %806 = vmatprep.subr.bf16.mxu0 0
    %807 = vmatpush1.bf16.msra.mxu0 0
    %808 = vmatprep.subr.bf16.mxu0 0
    %809 = vmatpush1.bf16.msra.mxu0 0
    %810 = vmatprep.subr.bf16.mxu0 0
    %811 = vmatpush1.bf16.msra.mxu0 0
    %812 = vmatprep.subr.bf16.mxu0 0
    %813 = vmatpush1.bf16.msra.mxu0 0
    %814 = vmatprep.subr.bf16.mxu0 0
    %815 = vmatpush1.bf16.msra.mxu0 0
    %816 = vmatprep.subr.bf16.mxu0 0
    %817 = vmatpush1.bf16.msra.mxu0 0
    %818 = vmatprep.subr.bf16.mxu0 0
    %819 = vmatpush1.bf16.msra.mxu0 0
    %820 = vmatprep.subr.bf16.mxu0 0
    %821 = vmatpush1.bf16.msra.mxu0 0
    %822 = vmatprep.mubr.bf16.mxu0 0
    %823 = vmatmul.mubr.bf16.gmra.mrb[0].mxu0 %v504
    %v824 = vpop.f32.mrb[0].mxu0
    %v825 = vadd.f32 %v527, %v824
    %v826 = vpop.f32.mrb[0].mxu0
    %v827 = vadd.f32 %v531, %v826
    %v828 = vpop.f32.mrb[0].mxu0
    %v829 = vadd.f32 %v527, %v828
    %v830 = vpop.f32.mrb[0].mxu0
    %v831 = vadd.f32 %v531, %v830
    %832 = vdwg.mxu0
    %v833 = vmax.f32 %v825, %v827
    %834 = vmax.xlane.f32.xlu0 %v833
    %v835 = vpop.xlane.xlu0 %834
    %v836 = vmax.f32 %v829, %v831
    %837 = vmax.xlane.f32.xlu0 %v836
    %v838 = vpop.xlane.xlu0 %837
    %v839 = vsub.f32 %v825, %v835
    %v840 = vsub.f32 %v827, %v835
    %v841 = vsub.f32 %v829, %v838
    %v842 = vsub.f32 %v831, %v838
    %v843 = vmul.f32 %v839, 1.442695
    %v844 = vpow.pop %v843
    %v845 = vmul.f32 %v840, 1.442695
    %v846 = vpow.pop %v845
    %v847 = vmul.f32 %v841, 1.442695
    %v848 = vpow.pop %v847
    %v849 = vmul.f32 %v842, 1.442695
    %v850 = vpow.pop %v849
    %v851 = vadd.f32 %v844, %v846
    %852 = vadd.xlane.f32.xlu0 %v851
    %v853 = vpop.xlane.xlu0 %852
    %v854 = vadd.f32 %v848, %v850
    %855 = vadd.xlane.f32.xlu0 %v854
    %v856 = vpop.xlane.xlu0 %855
    %v857 = vrcp.pop %v853
    %v858 = vrcp.pop %v856
    %v859 = vmul.f32 %v844, %v857
    %v860 = vmul.f32 %v846, %v857
    %v861 = vmul.f32 %v848, %v858
    %v862 = vmul.f32 %v850, %v858
    %863 = vset.pattern.permute.xlu0 2
    %864 = vperm.xlu0 %863, %v192
    %v865 = vpop.permute.xlu0 %864
    %867 = vset.pattern.permute.xlu0 2
    %868 = vperm.xlu0 %867, %v193
    %v869 = vpop.permute.xlu0 %868
    %v871 = vmul.f32 %v865, %v859
    %v872 = vmul.f32 %v865, %v860
    %v873 = vmul.f32 %v869, %v861
    %v874 = vmul.f32 %v869, %v862
    %v875 = vadd.f32 %v786, %v871
    %v876 = vadd.f32 %v787, %v872
    %v877 = vadd.f32 %v788, %v873
    %v878 = vadd.f32 %v789, %v874
    %879 = vmatprep.subr.bf16.mxu0 %v583
    %880 = vmatpush1.bf16.msra.mxu0 %v582
    %881 = vmatprep.subr.bf16.mxu0 %v585
    %882 = vmatpush1.bf16.msra.mxu0 %v584
    %883 = vmatprep.subr.bf16.mxu0 %v587
    %884 = vmatpush1.bf16.msra.mxu0 %v586
    %885 = vmatprep.subr.bf16.mxu0 %v589
    %886 = vmatpush1.bf16.msra.mxu0 %v588
    %887 = vmatprep.subr.bf16.mxu0 %v591
    %888 = vmatpush1.bf16.msra.mxu0 %v590
    %889 = vmatprep.subr.bf16.mxu0 %v593
    %890 = vmatpush1.bf16.msra.mxu0 %v592
    %891 = vmatprep.subr.bf16.mxu0 %v595
    %892 = vmatpush1.bf16.msra.mxu0 %v594
    %893 = vmatprep.subr.bf16.mxu0 %v597
    %894 = vmatpush1.bf16.msra.mxu0 %v596
    %895 = vmatprep.subr.bf16.mxu0 0
    %896 = vmatpush1.bf16.msra.mxu0 0
    %897 = vmatprep.subr.bf16.mxu0 0
    %898 = vmatpush1.bf16.msra.mxu0 0
    %899 = vmatprep.subr.bf16.mxu0 0
    %900 = vmatpush1.bf16.msra.mxu0 0
    %901 = vmatprep.subr.bf16.mxu0 0
    %902 = vmatpush1.bf16.msra.mxu0 0
    %903 = vmatprep.subr.bf16.mxu0 0
    %904 = vmatpush1.bf16.msra.mxu0 0
    %905 = vmatprep.subr.bf16.mxu0 0
    %906 = vmatpush1.bf16.msra.mxu0 0
    %907 = vmatprep.subr.bf16.mxu0 0
    %908 = vmatpush1.bf16.msra.mxu0 0
    %909 = vmatprep.subr.bf16.mxu0 0
    %910 = vmatpush1.bf16.msra.mxu0 0
    %911 = vmatprep.mubr.bf16.mxu0 0
    %912 = vmatmul.mubr.bf16.gmra.mrb[0].mxu0 %v505
    %v913 = vpop.f32.mrb[0].mxu0
    %v914 = vadd.f32 %v527, %v913
    %v915 = vpop.f32.mrb[0].mxu0
    %v916 = vadd.f32 %v531, %v915
    %v917 = vpop.f32.mrb[0].mxu0
    %v918 = vadd.f32 %v527, %v917
    %v919 = vpop.f32.mrb[0].mxu0
    %v920 = vadd.f32 %v531, %v919
    %921 = vdwg.mxu0
    %v922 = vmax.f32 %v914, %v916
    %923 = vmax.xlane.f32.xlu0 %v922
    %v924 = vpop.xlane.xlu0 %923
    %v925 = vmax.f32 %v918, %v920
    %926 = vmax.xlane.f32.xlu0 %v925
    %v927 = vpop.xlane.xlu0 %926
    %v928 = vsub.f32 %v914, %v924
    %v929 = vsub.f32 %v916, %v924
    %v930 = vsub.f32 %v918, %v927
    %v931 = vsub.f32 %v920, %v927
    %v932 = vmul.f32 %v928, 1.442695
    %v933 = vpow.pop %v932
    %v934 = vmul.f32 %v929, 1.442695
    %v935 = vpow.pop %v934
    %v936 = vmul.f32 %v930, 1.442695
    %v937 = vpow.pop %v936
    %v938 = vmul.f32 %v931, 1.442695
    %v939 = vpow.pop %v938
    %v940 = vadd.f32 %v933, %v935
    %941 = vadd.xlane.f32.xlu0 %v940
    %v942 = vpop.xlane.xlu0 %941
    %v943 = vadd.f32 %v937, %v939
    %944 = vadd.xlane.f32.xlu0 %v943
    %v945 = vpop.xlane.xlu0 %944
    %v946 = vrcp.pop %v942
    %v947 = vrcp.pop %v945
    %v948 = vmul.f32 %v933, %v946
    %v949 = vmul.f32 %v935, %v946
    %v950 = vmul.f32 %v937, %v947
    %v951 = vmul.f32 %v939, %v947
    %952 = vset.pattern.permute.xlu0 3
    %953 = vperm.xlu0 %952, %v192
    %v954 = vpop.permute.xlu0 %953
    %956 = vset.pattern.permute.xlu0 3
    %957 = vperm.xlu0 %956, %v193
    %v958 = vpop.permute.xlu0 %957
    %v960 = vmul.f32 %v954, %v948
    %v961 = vmul.f32 %v954, %v949
    %v962 = vmul.f32 %v958, %v950
    %v963 = vmul.f32 %v958, %v951
    %v964 = vadd.f32 %v875, %v960
    %v965 = vadd.f32 %v876, %v961
    %v966 = vadd.f32 %v877, %v962
    %v967 = vadd.f32 %v878, %v963
    %v968 = vlog2.pop %v964
    %v969 = vmul.f32 %v968, 0.6931472
    %v970 = vlog2.pop %v965
    %v971 = vmul.f32 %v970, 0.6931472
    %v972 = vlog2.pop %v966
    %v973 = vmul.f32 %v972, 0.6931472
    %v974 = vlog2.pop %v967
    %v975 = vmul.f32 %v974, 0.6931472
    %976 = vst [vmem:[#allocation7] sm:$0xff] %v969
    %977 = vst [vmem:[#allocation7 + $0x8] sm:$0xff] %v971
    %978 = vst [vmem:[#allocation7 + $0x10] sm:$0xff] %v973
    %979 = vst [vmem:[#allocation7 + $0x18] sm:$0xff] %v975
    // Predicated region
    $region38: #{tpu_custom_call.1} parent=1 // pred_check
      _
    $region39: #{tpu_custom_call.1} parent=1 // pred_check_branch
      %981 = sbr.rel (0) target = $region41
    $region40: #{tpu_custom_call.1} parent=1 // pred_region
      %s983 = ssub.s32 512, 512
      %984 = vsyncadd [#allocation4], %s983
      %s985 = sshll.u32 [#allocation7], 4
      %s986 = int_to_ptr.vmem [resolvable:$true] %s985
      %991 = dma.vmem_to_hbm [thread:$0]  %s986, 512, %s7, [#allocation4], 256, 256, 16
    $region41: #{tpu_custom_call.1} parent=1 // pred_fallthru
      _
    // Predicated region
    $region42: #{tpu_custom_call.1} parent=1 // pred_check
      _
    $region43: #{tpu_custom_call.1} parent=1 // pred_check_branch
      %993 = sbr.rel (0) target = $region45
    $region44: #{tpu_custom_call.1} parent=1 // pred_region
      %994 = dma.done [#allocation4], 512
    $region45: #{tpu_custom_call.1} parent=1 // pred_fallthru
      _
    %995 = vsyncpa [#allocation3], 1
    %996 = vsyncpa [#allocation6], 1
    %997 = vsyncpa [#allocation4], 1

// kernel: tpu_custom_call.1
$region0: #{tpu_custom_call.1}
  #allocation0 [shape = 'u32[]', space=smem, size = 0x4, offset = 0x4, fixed_abs, tag = 'smem constant byte address 0x4 - core index']
  #allocation1 [shape = 'u32[144,128]{1,0:T(1,128)}', space=vmem, size = 0x12000, scoped, tag = 'internal scratch']
  %s0 = inlined_call_operand.vmem [shape: f32[16,128], index: 0, kind: input, shape index: {}]
  %s1 = inlined_call_operand.hbm [shape: bf16[128,512], index: 1, kind: input, shape index: {}]
  %s2 = inlined_call_operand.vmem [shape: f32[1,512], index: 2, kind: input, shape index: {}]
  %s3 = inlined_call_operand.vmem [shape: bf16[128,4], index: 3, kind: input, shape index: {}]
  %s4 = inlined_call_operand.vmem [shape: f32[1,4], index: 4, kind: input, shape index: {}]
  %s5 = inlined_call_operand.hbm [shape: bf16[128,256], index: 5, kind: input, shape index: {}]
  %s6 = inlined_call_operand.vmem [shape: f32[1,256], index: 6, kind: input, shape index: {}]
  %s7 = inlined_call_operand.hbm [shape: f32[16,256], index: 7, kind: output, shape index: {}]
  %s8 = sld [smem:[#allocation0]]
  $region46: #{tpu_custom_call.1} parent=0
    _
  %s10 = ssub.s32 1, %s8
  %s11 = scalar_select 0, %s10, %s8
  $region1: #{tpu_custom_call.1} parent=0
    #allocation2 [shape = 'u8[131072]{0}', space=vmem, size = 0x20000, scoped, tag = 'input window, operand 1, single buffered']
    #allocation3 [shape = 's32[1]{0}', space=sflag, size = 0x4, scoped, tag = 'scoped memory for tpu_custom_call.1']
    #allocation4 [shape = 's32[1]{0}', space=sflag, size = 0x4, scoped, tag = 'scoped memory for tpu_custom_call.1']
    #allocation5 [shape = 'u8[65536]{0}', space=vmem, size = 0x10000, scoped, tag = 'input window, operand 5, single buffered']
    #allocation6 [shape = 's32[1]{0}', space=sflag, size = 0x4, scoped, tag = 'scoped memory for tpu_custom_call.1']
    #allocation7 [shape = 'u8[16384]{0}', space=vmem, size = 0x4000, scoped, tag = 'output window, operand 0, single buffered']
    %12 = vsyncpa [#allocation3], 0
    %13 = vsyncpa [#allocation6], 0
    %14 = vsyncpa [#allocation4], 0
    // Predicated region
    $region2: #{tpu_custom_call.1} parent=1 // pred_check
      _
    $region3: #{tpu_custom_call.1} parent=1 // pred_check_branch
      %16 = sbr.rel (0) target = $region5
    $region4: #{tpu_custom_call.1} parent=1 // pred_region
      _
    $region5: #{tpu_custom_call.1} parent=1 // pred_fallthru
      _
    // Predicated region
    $region6: #{tpu_custom_call.1} parent=1 // pred_check
      _
    $region7: #{tpu_custom_call.1} parent=1 // pred_check_branch
      %18 = sbr.rel (0) target = $region9
    $region8: #{tpu_custom_call.1} parent=1 // pred_region
      %s20 = ssub.s32 4096, 4096
      %21 = vsyncadd [#allocation3], %s20
      %s22 = sshll.u32 [#allocation2], 4
      %s23 = int_to_ptr.vmem [resolvable:$true] %s22
      %28 = dma.hbm_to_vmem [thread:$0]  %s1, 4096, %s23, [#allocation3], 256, 256, 16
    $region9: #{tpu_custom_call.1} parent=1 // pred_fallthru
      _
    // Predicated region
    $region10: #{tpu_custom_call.1} parent=1 // pred_check
      _
    $region11: #{tpu_custom_call.1} parent=1 // pred_check_branch
      %30 = sbr.rel (0) target = $region13
    $region12: #{tpu_custom_call.1} parent=1 // pred_region
      _
    $region13: #{tpu_custom_call.1} parent=1 // pred_fallthru
      _
    // Predicated region
    $region14: #{tpu_custom_call.1} parent=1 // pred_check
      _
    $region15: #{tpu_custom_call.1} parent=1 // pred_check_branch
      %32 = sbr.rel (0) target = $region17
    $region16: #{tpu_custom_call.1} parent=1 // pred_region
      _
    $region17: #{tpu_custom_call.1} parent=1 // pred_fallthru
      _
    // Predicated region
    $region18: #{tpu_custom_call.1} parent=1 // pred_check
      _
    $region19: #{tpu_custom_call.1} parent=1 // pred_check_branch
      %34 = sbr.rel (0) target = $region21
    $region20: #{tpu_custom_call.1} parent=1 // pred_region
      _
    $region21: #{tpu_custom_call.1} parent=1 // pred_fallthru
      _
    // Predicated region
    $region22: #{tpu_custom_call.1} parent=1 // pred_check
      _
    $region23: #{tpu_custom_call.1} parent=1 // pred_check_branch
      %36 = sbr.rel (0) target = $region25
    $region24: #{tpu_custom_call.1} parent=1 // pred_region
      %s38 = ssub.s32 2048, 2048
      %39 = vsyncadd [#allocation6], %s38
      %s40 = sshll.u32 [#allocation5], 4
      %s41 = int_to_ptr.vmem [resolvable:$true] %s40
      %46 = dma.hbm_to_vmem [thread:$0]  %s5, 2048, %s41, [#allocation6], 128, 128, 8
    $region25: #{tpu_custom_call.1} parent=1 // pred_fallthru
      _
    // Predicated region
    $region26: #{tpu_custom_call.1} parent=1 // pred_check
      _
    $region27: #{tpu_custom_call.1} parent=1 // pred_check_branch
      %48 = sbr.rel (0) target = $region29
    $region28: #{tpu_custom_call.1} parent=1 // pred_region
      _
    $region29: #{tpu_custom_call.1} parent=1 // pred_fallthru
      _
    // Predicated region
    $region30: #{tpu_custom_call.1} parent=1 // pred_check
      _
    $region31: #{tpu_custom_call.1} parent=1 // pred_check_branch
      %50 = sbr.rel (0) target = $region33
    $region32: #{tpu_custom_call.1} parent=1 // pred_region
      %51 = dma.done [#allocation3], 4096
    $region33: #{tpu_custom_call.1} parent=1 // pred_fallthru
      _
    // Predicated region
    $region34: #{tpu_custom_call.1} parent=1 // pred_check
      _
    $region35: #{tpu_custom_call.1} parent=1 // pred_check_branch
      %53 = sbr.rel (0) target = $region37
    $region36: #{tpu_custom_call.1} parent=1 // pred_region
      %54 = dma.done [#allocation6], 2048
    $region37: #{tpu_custom_call.1} parent=1 // pred_fallthru
      _
    %v56 = vld [vmem:[%s0] sm:$0xff]
    %v57 = vld [vmem:[%s0 + $0x8] sm:$0xff]
    %v58 = vpack.c.bf16 %v57, %v56
    %v59 = vld [vmem:[%s3] sm:$0xf]
    %v60 = vld [vmem:[%s3 + $0x4] sm:$0xf]
    %v61 = vld [vmem:[%s3 + $0x8] sm:$0xf]
    %v62 = vld [vmem:[%s3 + $0xc] sm:$0xf]
    %v63 = vld [vmem:[%s3 + $0x10] sm:$0xf]
    %v64 = vld [vmem:[%s3 + $0x14] sm:$0xf]
    %v65 = vld [vmem:[%s3 + $0x18] sm:$0xf]
    %v66 = vld [vmem:[%s3 + $0x1c] sm:$0xf]
    %v67 = vld [vmem:[%s3 + $0x20] sm:$0xf]
    %v68 = vld [vmem:[%s3 + $0x24] sm:$0xf]
    %v69 = vld [vmem:[%s3 + $0x28] sm:$0xf]
    %v70 = vld [vmem:[%s3 + $0x2c] sm:$0xf]
    %v71 = vld [vmem:[%s3 + $0x30] sm:$0xf]
    %v72 = vld [vmem:[%s3 + $0x34] sm:$0xf]
    %v73 = vld [vmem:[%s3 + $0x38] sm:$0xf]
    %v74 = vld [vmem:[%s3 + $0x3c] sm:$0xf]
    %v75 = vld [vmem:[%s4] sm:$0x1]
    %v77 = vlaneseq
    %v78 = vshrl.u32 %v77, 7
    %v79 = vsub.s32 0, %v78
    %v80 = vrot.slane %v75, %v79
    %v98 = vunpack.c.l.b16 %v59
    %v99 = vunpack.c.l.b16 %v60
    %v100 = vunpack.c.l.b16 %v61
    %v101 = vunpack.c.l.b16 %v62
    %v102 = vunpack.c.l.b16 %v63
    %v103 = vunpack.c.l.b16 %v64
    %v104 = vunpack.c.l.b16 %v65
    %v105 = vunpack.c.l.b16 %v66
    %v106 = vunpack.c.l.b16 %v67
    %v107 = vunpack.c.l.b16 %v68
    %v108 = vunpack.c.l.b16 %v69
    %v109 = vunpack.c.l.b16 %v70
    %v110 = vunpack.c.l.b16 %v71
    %v111 = vunpack.c.l.b16 %v72
    %v112 = vunpack.c.l.b16 %v73
    %v113 = vunpack.c.l.b16 %v74
    %v114 = vpack.c.b16 %v99, %v98
    %v115 = vpack.c.b16 %v101, %v100
    %v116 = vpack.c.b16 %v103, %v102
    %v117 = vpack.c.b16 %v105, %v104
    %v118 = vpack.c.b16 %v107, %v106
    %v119 = vpack.c.b16 %v109, %v108
    %v120 = vpack.c.b16 %v111, %v110
    %v121 = vpack.c.b16 %v113, %v112
    %130 = vmatprep.subr.bf16.mxu0 0
    %131 = vmatpush1.bf16.msra.mxu0 %v114
    %132 = vmatprep.subr.bf16.mxu0 0
    %133 = vmatpush1.bf16.msra.mxu0 %v115
    %134 = vmatprep.subr.bf16.mxu0 0
    %135 = vmatpush1.bf16.msra.mxu0 %v116
    %136 = vmatprep.subr.bf16.mxu0 0
    %137 = vmatpush1.bf16.msra.mxu0 %v117
    %138 = vmatprep.subr.bf16.mxu0 0
    %139 = vmatpush1.bf16.msra.mxu0 %v118
    %140 = vmatprep.subr.bf16.mxu0 0
    %141 = vmatpush1.bf16.msra.mxu0 %v119
    %142 = vmatprep.subr.bf16.mxu0 0
    %143 = vmatpush1.bf16.msra.mxu0 %v120
    %144 = vmatprep.subr.bf16.mxu0 0
    %145 = vmatpush1.bf16.msra.mxu0 %v121
    %146 = vmatprep.subr.bf16.mxu0 0
    %147 = vmatpush1.bf16.msra.mxu0 0
    %148 = vmatprep.subr.bf16.mxu0 0
    %149 = vmatpush1.bf16.msra.mxu0 0
    %150 = vmatprep.subr.bf16.mxu0 0
    %151 = vmatpush1.bf16.msra.mxu0 0
    %152 = vmatprep.subr.bf16.mxu0 0
    %153 = vmatpush1.bf16.msra.mxu0 0
    %154 = vmatprep.subr.bf16.mxu0 0
    %155 = vmatpush1.bf16.msra.mxu0 0
    %156 = vmatprep.subr.bf16.mxu0 0
    %157 = vmatpush1.bf16.msra.mxu0 0
    %158 = vmatprep.subr.bf16.mxu0 0
    %159 = vmatpush1.bf16.msra.mxu0 0
    %160 = vmatprep.subr.bf16.mxu0 0
    %161 = vmatpush1.bf16.msra.mxu0 0
    %162 = vmatprep.mubr.bf16.mxu0 0
    %163 = vmatmul.mubr.bf16.gmra.mrb[0].mxu0 %v58
    %v164 = vpop.f32.mrb[0].mxu0
    %v165 = vadd.f32 %v80, %v164
    %v166 = vpop.f32.mrb[0].mxu0
    %v167 = vpop.f32.mrb[0].mxu0
    %v168 = vadd.f32 %v80, %v167
    %v169 = vpop.f32.mrb[0].mxu0
    %170 = vdwg.mxu0
    %vm171 = vcmask 31744
    %v172 = vsel %vm171, %v165, -inf
    %173 = vmax.xlane.f32.xlu0 %v172
    %v174 = vpop.xlane.xlu0 %173
    %v175 = vsel %vm171, %v168, -inf
    %176 = vmax.xlane.f32.xlu0 %v175
    %v177 = vpop.xlane.xlu0 %176
    %v178 = vsub.f32 %v165, %v174
    %v179 = vsub.f32 %v168, %v177
    %v180 = vmul.f32 %v178, 1.442695
    %v181 = vpow.pop %v180
    %v182 = vmul.f32 %v179, 1.442695
    %v183 = vpow.pop %v182
    %v184 = vsel %vm171, %v181, 0.0
    %185 = vadd.xlane.f32.xlu0 %v184
    %v186 = vpop.xlane.xlu0 %185
    %v187 = vsel %vm171, %v183, 0.0
    %188 = vadd.xlane.f32.xlu0 %v187
    %v189 = vpop.xlane.xlu0 %188
    %v190 = vrcp.pop %v186
    %v191 = vrcp.pop %v189
    %v192 = vmul.f32 %v181, %v190
    %v193 = vmul.f32 %v183, %v191
    %v194 = vld [vmem:[#allocation2] sm:$0xff]
    %v195 = vld [vmem:[#allocation2 + $0x8] sm:$0xff]
    %v196 = vld [vmem:[#allocation2 + $0x10] sm:$0xff]
    %v197 = vld [vmem:[#allocation2 + $0x18] sm:$0xff]
    %v198 = vld [vmem:[#allocation2 + $0x20] sm:$0xff]
    %v199 = vld [vmem:[#allocation2 + $0x28] sm:$0xff]
    %v200 = vld [vmem:[#allocation2 + $0x30] sm:$0xff]
    %v201 = vld [vmem:[#allocation2 + $0x38] sm:$0xff]
    %v202 = vld [vmem:[#allocation2 + $0x40] sm:$0xff]
    %v203 = vld [vmem:[#allocation2 + $0x48] sm:$0xff]
    %v204 = vld [vmem:[#allocation2 + $0x50] sm:$0xff]
    %v205 = vld [vmem:[#allocation2 + $0x58] sm:$0xff]
    %v206 = vld [vmem:[#allocation2 + $0x60] sm:$0xff]
    %v207 = vld [vmem:[#allocation2 + $0x68] sm:$0xff]
    %v208 = vld [vmem:[#allocation2 + $0x70] sm:$0xff]
    %v209 = vld [vmem:[#allocation2 + $0x78] sm:$0xff]
    %v210 = vld [vmem:[#allocation2 + $0x80] sm:$0xff]
    %v211 = vld [vmem:[#allocation2 + $0x88] sm:$0xff]
    %v212 = vld [vmem:[#allocation2 + $0x90] sm:$0xff]
    %v213 = vld [vmem:[#allocation2 + $0x98] sm:$0xff]
    %v214 = vld [vmem:[#allocation2 + $0xa0] sm:$0xff]
    %v215 = vld [vmem:[#allocation2 + $0xa8] sm:$0xff]
    %v216 = vld [vmem:[#allocation2 + $0xb0] sm:$0xff]
    %v217 = vld [vmem:[#allocation2 + $0xb8] sm:$0xff]
    %v218 = vld [vmem:[#allocation2 + $0xc0] sm:$0xff]
    %v219 = vld [vmem:[#allocation2 + $0xc8] sm:$0xff]
    %v220 = vld [vmem:[#allocation2 + $0xd0] sm:$0xff]
    %v221 = vld [vmem:[#allocation2 + $0xd8] sm:$0xff]
    %v222 = vld [vmem:[#allocation2 + $0xe0] sm:$0xff]
    %v223 = vld [vmem:[#allocation2 + $0xe8] sm:$0xff]
    %v224 = vld [vmem:[#allocation2 + $0xf0] sm:$0xff]
    %v225 = vld [vmem:[#allocation2 + $0xf8] sm:$0xff]
    %v226 = vld [vmem:[%s2] sm:$0xf]
    %v228 = vlaneseq
    %v229 = vshrl.u32 %v228, 7
    %v230 = vsub.s32 0, %v229
    %v231 = vrot.slane %v226, %v230
    %v232 = vlaneseq
    %v233 = vshrl.u32 %v232, 7
    %v234 = vsub.s32 1, %v233
    %v235 = vrot.slane %v226, %v234
    %v236 = vlaneseq
    %v237 = vshrl.u32 %v236, 7
    %v238 = vsub.s32 2, %v237
    %v239 = vrot.slane %v226, %v238
    %v240 = vlaneseq
    %v241 = vshrl.u32 %v240, 7
    %v242 = vsub.s32 3, %v241
    %v243 = vrot.slane %v226, %v242
    %v280 = vunpack.c.l.b16 %v194
    %v281 = vunpack.c.h.b16 %v194
    %v282 = vunpack.c.l.b16 %v195
    %v283 = vunpack.c.h.b16 %v195
    %v284 = vunpack.c.l.b16 %v196
    %v285 = vunpack.c.h.b16 %v196
    %v286 = vunpack.c.l.b16 %v197
    %v287 = vunpack.c.h.b16 %v197
    %v288 = vunpack.c.l.b16 %v198
    %v289 = vunpack.c.h.b16 %v198
    %v290 = vunpack.c.l.b16 %v199
    %v291 = vunpack.c.h.b16 %v199
    %v292 = vunpack.c.l.b16 %v200
    %v293 = vunpack.c.h.b16 %v200
    %v294 = vunpack.c.l.b16 %v201
    %v295 = vunpack.c.h.b16 %v201
    %v296 = vunpack.c.l.b16 %v202
    %v297 = vunpack.c.h.b16 %v202
    %v298 = vunpack.c.l.b16 %v203
    %v299 = vunpack.c.h.b16 %v203
    %v300 = vunpack.c.l.b16 %v204
    %v301 = vunpack.c.h.b16 %v204
    %v302 = vunpack.c.l.b16 %v205
    %v303 = vunpack.c.h.b16 %v205
    %v304 = vunpack.c.l.b16 %v206
    %v305 = vunpack.c.h.b16 %v206
    %v306 = vunpack.c.l.b16 %v207
    %v307 = vunpack.c.h.b16 %v207
    %v308 = vunpack.c.l.b16 %v208
    %v309 = vunpack.c.h.b16 %v208
    %v310 = vunpack.c.l.b16 %v209
    %v311 = vunpack.c.h.b16 %v209
    %v312 = vunpack.c.l.b16 %v210
    %v313 = vunpack.c.h.b16 %v210
    %v314 = vunpack.c.l.b16 %v211
    %v315 = vunpack.c.h.b16 %v211
    %v316 = vunpack.c.l.b16 %v212
    %v317 = vunpack.c.h.b16 %v212
    %v318 = vunpack.c.l.b16 %v213
    %v319 = vunpack.c.h.b16 %v213
    %v320 = vunpack.c.l.b16 %v214
    %v321 = vunpack.c.h.b16 %v214
    %v322 = vunpack.c.l.b16 %v215
    %v323 = vunpack.c.h.b16 %v215
    %v324 = vunpack.c.l.b16 %v216
    %v325 = vunpack.c.h.b16 %v216
    %v326 = vunpack.c.l.b16 %v217
    %v327 = vunpack.c.h.b16 %v217
    %v328 = vunpack.c.l.b16 %v218
    %v329 = vunpack.c.h.b16 %v218
    %v330 = vunpack.c.l.b16 %v219
    %v331 = vunpack.c.h.b16 %v219
    %v332 = vunpack.c.l.b16 %v220
    %v333 = vunpack.c.h.b16 %v220
    %v334 = vunpack.c.l.b16 %v221
    %v335 = vunpack.c.h.b16 %v221
    %v336 = vunpack.c.l.b16 %v222
    %v337 = vunpack.c.h.b16 %v222
    %v338 = vunpack.c.l.b16 %v223
    %v339 = vunpack.c.h.b16 %v223
    %v340 = vunpack.c.l.b16 %v224
    %v341 = vunpack.c.h.b16 %v224
    %v342 = vunpack.c.l.b16 %v225
    %v343 = vunpack.c.h.b16 %v225
    %v344 = vpack.c.b16 %v284, %v280
    %v345 = vpack.c.b16 %v285, %v281
    %v346 = vpack.c.b16 %v286, %v282
    %v347 = vpack.c.b16 %v287, %v283
    %v348 = vpack.c.b16 %v292, %v288
    %v349 = vpack.c.b16 %v293, %v289
    %v350 = vpack.c.b16 %v294, %v290
    %v351 = vpack.c.b16 %v295, %v291
    %v352 = vpack.c.b16 %v300, %v296
    %v353 = vpack.c.b16 %v301, %v297
    %v354 = vpack.c.b16 %v302, %v298
    %v355 = vpack.c.b16 %v303, %v299
    %v356 = vpack.c.b16 %v308, %v304
    %v357 = vpack.c.b16 %v309, %v305
    %v358 = vpack.c.b16 %v310, %v306
    %v359 = vpack.c.b16 %v311, %v307
    %v360 = vpack.c.b16 %v316, %v312
    %v361 = vpack.c.b16 %v317, %v313
    %v362 = vpack.c.b16 %v318, %v314
    %v363 = vpack.c.b16 %v319, %v315
    %v364 = vpack.c.b16 %v324, %v320
    %v365 = vpack.c.b16 %v325, %v321
    %v366 = vpack.c.b16 %v326, %v322
    %v367 = vpack.c.b16 %v327, %v323
    %v368 = vpack.c.b16 %v332, %v328
    %v369 = vpack.c.b16 %v333, %v329
    %v370 = vpack.c.b16 %v334, %v330
    %v371 = vpack.c.b16 %v335, %v331
    %v372 = vpack.c.b16 %v340, %v336
    %v373 = vpack.c.b16 %v341, %v337
    %v374 = vpack.c.b16 %v342, %v338
    %v375 = vpack.c.b16 %v343, %v339
    %408 = vmatprep.subr.bf16.mxu0 %v345
    %409 = vmatpush1.bf16.msra.mxu0 %v344
    %410 = vmatprep.subr.bf16.mxu0 %v349
    %411 = vmatpush1.bf16.msra.mxu0 %v348
    %412 = vmatprep.subr.bf16.mxu0 %v353
    %413 = vmatpush1.bf16.msra.mxu0 %v352
    %414 = vmatprep.subr.bf16.mxu0 %v357
    %415 = vmatpush1.bf16.msra.mxu0 %v356
    %416 = vmatprep.subr.bf16.mxu0 %v361
    %417 = vmatpush1.bf16.msra.mxu0 %v360
    %418 = vmatprep.subr.bf16.mxu0 %v365
    %419 = vmatpush1.bf16.msra.mxu0 %v364
    %420 = vmatprep.subr.bf16.mxu0 %v369
    %421 = vmatpush1.bf16.msra.mxu0 %v368
    %422 = vmatprep.subr.bf16.mxu0 %v373
    %423 = vmatpush1.bf16.msra.mxu0 %v372
    %424 = vmatprep.subr.bf16.mxu0 0
    %425 = vmatpush1.bf16.msra.mxu0 0
    %426 = vmatprep.subr.bf16.mxu0 0
    %427 = vmatpush1.bf16.msra.mxu0 0
    %428 = vmatprep.subr.bf16.mxu0 0
    %429 = vmatpush1.bf16.msra.mxu0 0
    %430 = vmatprep.subr.bf16.mxu0 0
    %431 = vmatpush1.bf16.msra.mxu0 0
    %432 = vmatprep.subr.bf16.mxu0 0
    %433 = vmatpush1.bf16.msra.mxu0 0
    %434 = vmatprep.subr.bf16.mxu0 0
    %435 = vmatpush1.bf16.msra.mxu0 0
    %436 = vmatprep.subr.bf16.mxu0 0
    %437 = vmatpush1.bf16.msra.mxu0 0
    %438 = vmatprep.subr.bf16.mxu0 0
    %439 = vmatpush1.bf16.msra.mxu0 0
    %440 = vmatprep.mubr.bf16.mxu0 0
    %441 = vmatmul.mubr.bf16.gmra.mrb[0].mxu0 %v58
    %v442 = vpop.f32.mrb[0].mxu0
    %v443 = vadd.f32 %v231, %v442
    %v444 = vpop.f32.mrb[0].mxu0
    %v445 = vadd.f32 %v235, %v444
    %v446 = vpop.f32.mrb[0].mxu0
    %v447 = vadd.f32 %v231, %v446
    %v448 = vpop.f32.mrb[0].mxu0
    %v449 = vadd.f32 %v235, %v448
    %450 = vdwg.mxu0
    %451 = vmatprep.subr.bf16.mxu0 %v347
    %452 = vmatpush1.bf16.msra.mxu0 %v346
    %453 = vmatprep.subr.bf16.mxu0 %v351
    %454 = vmatpush1.bf16.msra.mxu0 %v350
    %455 = vmatprep.subr.bf16.mxu0 %v355
    %456 = vmatpush1.bf16.msra.mxu0 %v354
    %457 = vmatprep.subr.bf16.mxu0 %v359
    %458 = vmatpush1.bf16.msra.mxu0 %v358
    %459 = vmatprep.subr.bf16.mxu0 %v363
    %460 = vmatpush1.bf16.msra.mxu0 %v362
    %461 = vmatprep.subr.bf16.mxu0 %v367
    %462 = vmatpush1.bf16.msra.mxu0 %v366
    %463 = vmatprep.subr.bf16.mxu0 %v371
    %464 = vmatpush1.bf16.msra.mxu0 %v370
    %465 = vmatprep.subr.bf16.mxu0 %v375
    %466 = vmatpush1.bf16.msra.mxu0 %v374
    %467 = vmatprep.subr.bf16.mxu0 0
    %468 = vmatpush1.bf16.msra.mxu0 0
    %469 = vmatprep.subr.bf16.mxu0 0
    %470 = vmatpush1.bf16.msra.mxu0 0
    %471 = vmatprep.subr.bf16.mxu0 0
    %472 = vmatpush1.bf16.msra.mxu0 0
    %473 = vmatprep.subr.bf16.mxu0 0
    %474 = vmatpush1.bf16.msra.mxu0 0
    %475 = vmatprep.subr.bf16.mxu0 0
    %476 = vmatpush1.bf16.msra.mxu0 0
    %477 = vmatprep.subr.bf16.mxu0 0
    %478 = vmatpush1.bf16.msra.mxu0 0
    %479 = vmatprep.subr.bf16.mxu0 0
    %480 = vmatpush1.bf16.msra.mxu0 0
    %481 = vmatprep.subr.bf16.mxu0 0
    %482 = vmatpush1.bf16.msra.mxu0 0
    %483 = vmatprep.mubr.bf16.mxu0 0
    %484 = vmatmul.mubr.bf16.gmra.mrb[0].mxu0 %v58
    %v485 = vpop.f32.mrb[0].mxu0
    %v486 = vadd.f32 %v239, %v485
    %v487 = vpop.f32.mrb[0].mxu0
    %v488 = vadd.f32 %v243, %v487
    %v489 = vpop.f32.mrb[0].mxu0
    %v490 = vadd.f32 %v239, %v489
    %v491 = vpop.f32.mrb[0].mxu0
    %v492 = vadd.f32 %v243, %v491
    %493 = vdwg.mxu0
    %v494 = vtanh.pop %v443
    %v495 = vtanh.pop %v445
    %v496 = vtanh.pop %v486
    %v497 = vtanh.pop %v488
    %v498 = vtanh.pop %v447
    %v499 = vtanh.pop %v449
    %v500 = vtanh.pop %v490
    %v501 = vtanh.pop %v492
    %v502 = vpack.c.bf16 %v498, %v494
    %v503 = vpack.c.bf16 %v499, %v495
    %v504 = vpack.c.bf16 %v500, %v496
    %v505 = vpack.c.bf16 %v501, %v497
    %v506 = vld [vmem:[#allocation5] sm:$0xff]
    %v507 = vld [vmem:[#allocation5 + $0x8] sm:$0xff]
    %v508 = vld [vmem:[#allocation5 + $0x10] sm:$0xff]
    %v509 = vld [vmem:[#allocation5 + $0x18] sm:$0xff]
    %v510 = vld [vmem:[#allocation5 + $0x20] sm:$0xff]
    %v511 = vld [vmem:[#allocation5 + $0x28] sm:$0xff]
    %v512 = vld [vmem:[#allocation5 + $0x30] sm:$0xff]
    %v513 = vld [vmem:[#allocation5 + $0x38] sm:$0xff]
    %v514 = vld [vmem:[#allocation5 + $0x40] sm:$0xff]
    %v515 = vld [vmem:[#allocation5 + $0x48] sm:$0xff]
    %v516 = vld [vmem:[#allocation5 + $0x50] sm:$0xff]
    %v517 = vld [vmem:[#allocation5 + $0x58] sm:$0xff]
    %v518 = vld [vmem:[#allocation5 + $0x60] sm:$0xff]
    %v519 = vld [vmem:[#allocation5 + $0x68] sm:$0xff]
    %v520 = vld [vmem:[#allocation5 + $0x70] sm:$0xff]
    %v521 = vld [vmem:[#allocation5 + $0x78] sm:$0xff]
    %v522 = vld [vmem:[%s6] sm:$0x3]
    %v524 = vlaneseq
    %v525 = vshrl.u32 %v524, 7
    %v526 = vsub.s32 0, %v525
    %v527 = vrot.slane %v522, %v526
    %v528 = vlaneseq
    %v529 = vshrl.u32 %v528, 7
    %v530 = vsub.s32 1, %v529
    %v531 = vrot.slane %v522, %v530
    %v550 = vunpack.c.l.b16 %v506
    %v551 = vunpack.c.h.b16 %v506
    %v552 = vunpack.c.l.b16 %v507
    %v553 = vunpack.c.h.b16 %v507
    %v554 = vunpack.c.l.b16 %v508
    %v555 = vunpack.c.h.b16 %v508
    %v556 = vunpack.c.l.b16 %v509
    %v557 = vunpack.c.h.b16 %v509
    %v558 = vunpack.c.l.b16 %v510
    %v559 = vunpack.c.h.b16 %v510
    %v560 = vunpack.c.l.b16 %v511
    %v561 = vunpack.c.h.b16 %v511
    %v562 = vunpack.c.l.b16 %v512
    %v563 = vunpack.c.h.b16 %v512
    %v564 = vunpack.c.l.b16 %v513
    %v565 = vunpack.c.h.b16 %v513
    %v566 = vunpack.c.l.b16 %v514
    %v567 = vunpack.c.h.b16 %v514
    %v568 = vunpack.c.l.b16 %v515
    %v569 = vunpack.c.h.b16 %v515
    %v570 = vunpack.c.l.b16 %v516
    %v571 = vunpack.c.h.b16 %v516
    %v572 = vunpack.c.l.b16 %v517
    %v573 = vunpack.c.h.b16 %v517
    %v574 = vunpack.c.l.b16 %v518
    %v575 = vunpack.c.h.b16 %v518
    %v576 = vunpack.c.l.b16 %v519
    %v577 = vunpack.c.h.b16 %v519
    %v578 = vunpack.c.l.b16 %v520
    %v579 = vunpack.c.h.b16 %v520
    %v580 = vunpack.c.l.b16 %v521
    %v581 = vunpack.c.h.b16 %v521
    %v582 = vpack.c.b16 %v552, %v550
    %v583 = vpack.c.b16 %v553, %v551
    %v584 = vpack.c.b16 %v556, %v554
    %v585 = vpack.c.b16 %v557, %v555
    %v586 = vpack.c.b16 %v560, %v558
    %v587 = vpack.c.b16 %v561, %v559
    %v588 = vpack.c.b16 %v564, %v562
    %v589 = vpack.c.b16 %v565, %v563
    %v590 = vpack.c.b16 %v568, %v566
    %v591 = vpack.c.b16 %v569, %v567
    %v592 = vpack.c.b16 %v572, %v570
    %v593 = vpack.c.b16 %v573, %v571
    %v594 = vpack.c.b16 %v576, %v574
    %v595 = vpack.c.b16 %v577, %v575
    %v596 = vpack.c.b16 %v580, %v578
    %v597 = vpack.c.b16 %v581, %v579
    %614 = vmatprep.subr.bf16.mxu0 %v583
    %615 = vmatpush1.bf16.msra.mxu0 %v582
    %616 = vmatprep.subr.bf16.mxu0 %v585
    %617 = vmatpush1.bf16.msra.mxu0 %v584
    %618 = vmatprep.subr.bf16.mxu0 %v587
    %619 = vmatpush1.bf16.msra.mxu0 %v586
    %620 = vmatprep.subr.bf16.mxu0 %v589
    %621 = vmatpush1.bf16.msra.mxu0 %v588
    %622 = vmatprep.subr.bf16.mxu0 %v591
    %623 = vmatpush1.bf16.msra.mxu0 %v590
    %624 = vmatprep.subr.bf16.mxu0 %v593
    %625 = vmatpush1.bf16.msra.mxu0 %v592
    %626 = vmatprep.subr.bf16.mxu0 %v595
    %627 = vmatpush1.bf16.msra.mxu0 %v594
    %628 = vmatprep.subr.bf16.mxu0 %v597
    %629 = vmatpush1.bf16.msra.mxu0 %v596
    %630 = vmatprep.subr.bf16.mxu0 0
    %631 = vmatpush1.bf16.msra.mxu0 0
    %632 = vmatprep.subr.bf16.mxu0 0
    %633 = vmatpush1.bf16.msra.mxu0 0
    %634 = vmatprep.subr.bf16.mxu0 0
    %635 = vmatpush1.bf16.msra.mxu0 0
    %636 = vmatprep.subr.bf16.mxu0 0
    %637 = vmatpush1.bf16.msra.mxu0 0
    %638 = vmatprep.subr.bf16.mxu0 0
    %639 = vmatpush1.bf16.msra.mxu0 0
    %640 = vmatprep.subr.bf16.mxu0 0
    %641 = vmatpush1.bf16.msra.mxu0 0
    %642 = vmatprep.subr.bf16.mxu0 0
    %643 = vmatpush1.bf16.msra.mxu0 0
    %644 = vmatprep.subr.bf16.mxu0 0
    %645 = vmatpush1.bf16.msra.mxu0 0
    %646 = vmatprep.mubr.bf16.mxu0 0
    %647 = vmatmul.mubr.bf16.gmra.mrb[0].mxu0 %v502
    %v648 = vpop.f32.mrb[0].mxu0
    %v649 = vadd.f32 %v527, %v648
    %v650 = vpop.f32.mrb[0].mxu0
    %v651 = vadd.f32 %v531, %v650
    %v652 = vpop.f32.mrb[0].mxu0
    %v653 = vadd.f32 %v527, %v652
    %v654 = vpop.f32.mrb[0].mxu0
    %v655 = vadd.f32 %v531, %v654
    %656 = vdwg.mxu0
    %v657 = vmax.f32 %v649, %v651
    %658 = vmax.xlane.f32.xlu0 %v657
    %v659 = vpop.xlane.xlu0 %658
    %v660 = vmax.f32 %v653, %v655
    %661 = vmax.xlane.f32.xlu0 %v660
    %v662 = vpop.xlane.xlu0 %661
    %v663 = vsub.f32 %v649, %v659
    %v664 = vsub.f32 %v651, %v659
    %v665 = vsub.f32 %v653, %v662
    %v666 = vsub.f32 %v655, %v662
    %v667 = vmul.f32 %v663, 1.442695
    %v668 = vpow.pop %v667
    %v669 = vmul.f32 %v664, 1.442695
    %v670 = vpow.pop %v669
    %v671 = vmul.f32 %v665, 1.442695
    %v672 = vpow.pop %v671
    %v673 = vmul.f32 %v666, 1.442695
    %v674 = vpow.pop %v673
    %v675 = vadd.f32 %v668, %v670
    %676 = vadd.xlane.f32.xlu0 %v675
    %v677 = vpop.xlane.xlu0 %676
    %v678 = vadd.f32 %v672, %v674
    %679 = vadd.xlane.f32.xlu0 %v678
    %v680 = vpop.xlane.xlu0 %679
    %v681 = vrcp.pop %v677
    %v682 = vrcp.pop %v680
    %v683 = vmul.f32 %v668, %v681
    %v684 = vmul.f32 %v670, %v681
    %v685 = vmul.f32 %v672, %v682
    %v686 = vmul.f32 %v674, %v682
    %688 = vset.pattern.permute.xlu0 0
    %689 = vperm.xlu0 %688, %v192
    %v690 = vpop.permute.xlu0 %689
    %693 = vset.pattern.permute.xlu0 0
    %694 = vperm.xlu0 %693, %v193
    %v695 = vpop.permute.xlu0 %694
    %v697 = vmul.f32 %v690, %v683
    %v698 = vmul.f32 %v690, %v684
    %v699 = vmul.f32 %v695, %v685
    %v700 = vmul.f32 %v695, %v686
    %701 = vmatprep.subr.bf16.mxu0 %v583
    %702 = vmatpush1.bf16.msra.mxu0 %v582
    %703 = vmatprep.subr.bf16.mxu0 %v585
    %704 = vmatpush1.bf16.msra.mxu0 %v584
    %705 = vmatprep.subr.bf16.mxu0 %v587
    %706 = vmatpush1.bf16.msra.mxu0 %v586
    %707 = vmatprep.subr.bf16.mxu0 %v589
    %708 = vmatpush1.bf16.msra.mxu0 %v588
    %709 = vmatprep.subr.bf16.mxu0 %v591
    %710 = vmatpush1.bf16.msra.mxu0 %v590
    %711 = vmatprep.subr.bf16.mxu0 %v593
    %712 = vmatpush1.bf16.msra.mxu0 %v592
    %713 = vmatprep.subr.bf16.mxu0 %v595
    %714 = vmatpush1.bf16.msra.mxu0 %v594
    %715 = vmatprep.subr.bf16.mxu0 %v597
    %716 = vmatpush1.bf16.msra.mxu0 %v596
    %717 = vmatprep.subr.bf16.mxu0 0
    %718 = vmatpush1.bf16.msra.mxu0 0
    %719 = vmatprep.subr.bf16.mxu0 0
    %720 = vmatpush1.bf16.msra.mxu0 0
    %721 = vmatprep.subr.bf16.mxu0 0
    %722 = vmatpush1.bf16.msra.mxu0 0
    %723 = vmatprep.subr.bf16.mxu0 0
    %724 = vmatpush1.bf16.msra.mxu0 0
    %725 = vmatprep.subr.bf16.mxu0 0
    %726 = vmatpush1.bf16.msra.mxu0 0
    %727 = vmatprep.subr.bf16.mxu0 0
    %728 = vmatpush1.bf16.msra.mxu0 0
    %729 = vmatprep.subr.bf16.mxu0 0
    %730 = vmatpush1.bf16.msra.mxu0 0
    %731 = vmatprep.subr.bf16.mxu0 0
    %732 = vmatpush1.bf16.msra.mxu0 0
    %733 = vmatprep.mubr.bf16.mxu0 0
    %734 = vmatmul.mubr.bf16.gmra.mrb[0].mxu0 %v503
    %v735 = vpop.f32.mrb[0].mxu0
    %v736 = vadd.f32 %v527, %v735
    %v737 = vpop.f32.mrb[0].mxu0
    %v738 = vadd.f32 %v531, %v737
    %v739 = vpop.f32.mrb[0].mxu0
    %v740 = vadd.f32 %v527, %v739
    %v741 = vpop.f32.mrb[0].mxu0
    %v742 = vadd.f32 %v531, %v741
    %743 = vdwg.mxu0
    %v744 = vmax.f32 %v736, %v738
    %745 = vmax.xlane.f32.xlu0 %v744
    %v746 = vpop.xlane.xlu0 %745
    %v747 = vmax.f32 %v740, %v742
    %748 = vmax.xlane.f32.xlu0 %v747
    %v749 = vpop.xlane.xlu0 %748
    %v750 = vsub.f32 %v736, %v746
    %v751 = vsub.f32 %v738, %v746
    %v752 = vsub.f32 %v740, %v749
    %v753 = vsub.f32 %v742, %v749
    %v754 = vmul.f32 %v750, 1.442695
    %v755 = vpow.pop %v754
    %v756 = vmul.f32 %v751, 1.442695
    %v757 = vpow.pop %v756
    %v758 = vmul.f32 %v752, 1.442695
    %v759 = vpow.pop %v758
    %v760 = vmul.f32 %v753, 1.442695
    %v761 = vpow.pop %v760
    %v762 = vadd.f32 %v755, %v757
    %763 = vadd.xlane.f32.xlu0 %v762
    %v764 = vpop.xlane.xlu0 %763
    %v765 = vadd.f32 %v759, %v761
    %766 = vadd.xlane.f32.xlu0 %v765
    %v767 = vpop.xlane.xlu0 %766
    %v768 = vrcp.pop %v764
    %v769 = vrcp.pop %v767
    %v770 = vmul.f32 %v755, %v768
    %v771 = vmul.f32 %v757, %v768
    %v772 = vmul.f32 %v759, %v769
    %v773 = vmul.f32 %v761, %v769
    %774 = vset.pattern.permute.xlu0 1
    %775 = vperm.xlu0 %774, %v192
    %v776 = vpop.permute.xlu0 %775
    %778 = vset.pattern.permute.xlu0 1
    %779 = vperm.xlu0 %778, %v193
    %v780 = vpop.permute.xlu0 %779
    %v782 = vmul.f32 %v776, %v770
    %v783 = vmul.f32 %v776, %v771
    %v784 = vmul.f32 %v780, %v772
    %v785 = vmul.f32 %v780, %v773
    %v786 = vadd.f32 %v697, %v782
    %v787 = vadd.f32 %v698, %v783
    %v788 = vadd.f32 %v699, %v784
    %v789 = vadd.f32 %v700, %v785
    %790 = vmatprep.subr.bf16.mxu0 %v583
    %791 = vmatpush1.bf16.msra.mxu0 %v582
    %792 = vmatprep.subr.bf16.mxu0 %v585
    %793 = vmatpush1.bf16.msra.mxu0 %v584
    %794 = vmatprep.subr.bf16.mxu0 %v587
    %795 = vmatpush1.bf16.msra.mxu0 %v586
    %796 = vmatprep.subr.bf16.mxu0 %v589
    %797 = vmatpush1.bf16.msra.mxu0 %v588
    %798 = vmatprep.subr.bf16.mxu0 %v591
    %799 = vmatpush1.bf16.msra.mxu0 %v590
    %800 = vmatprep.subr.bf16.mxu0 %v593
    %801 = vmatpush1.bf16.msra.mxu0 %v592
    %802 = vmatprep.subr.bf16.mxu0 %v595
    %803 = vmatpush1.bf16.msra.mxu0 %v594
    %804 = vmatprep.subr.bf16.mxu0 %v597
    %805 = vmatpush1.bf16.msra.mxu0 %v596
    %806 = vmatprep.subr.bf16.mxu0 0
    %807 = vmatpush1.bf16.msra.mxu0 0
    %808 = vmatprep.subr.bf16.mxu0 0
    %809 = vmatpush1.bf16.msra.mxu0 0
    %810 = vmatprep.subr.bf16.mxu0 0
    %811 = vmatpush1.bf16.msra.mxu0 0
    %812 = vmatprep.subr.bf16.mxu0 0
    %813 = vmatpush1.bf16.msra.mxu0 0
    %814 = vmatprep.subr.bf16.mxu0 0
    %815 = vmatpush1.bf16.msra.mxu0 0
    %816 = vmatprep.subr.bf16.mxu0 0
    %817 = vmatpush1.bf16.msra.mxu0 0
    %818 = vmatprep.subr.bf16.mxu0 0
    %819 = vmatpush1.bf16.msra.mxu0 0
    %820 = vmatprep.subr.bf16.mxu0 0
    %821 = vmatpush1.bf16.msra.mxu0 0
    %822 = vmatprep.mubr.bf16.mxu0 0
    %823 = vmatmul.mubr.bf16.gmra.mrb[0].mxu0 %v504
    %v824 = vpop.f32.mrb[0].mxu0
    %v825 = vadd.f32 %v527, %v824
    %v826 = vpop.f32.mrb[0].mxu0
    %v827 = vadd.f32 %v531, %v826
    %v828 = vpop.f32.mrb[0].mxu0
    %v829 = vadd.f32 %v527, %v828
    %v830 = vpop.f32.mrb[0].mxu0
    %v831 = vadd.f32 %v531, %v830
    %832 = vdwg.mxu0
    %v833 = vmax.f32 %v825, %v827
    %834 = vmax.xlane.f32.xlu0 %v833
    %v835 = vpop.xlane.xlu0 %834
    %v836 = vmax.f32 %v829, %v831
    %837 = vmax.xlane.f32.xlu0 %v836
    %v838 = vpop.xlane.xlu0 %837
    %v839 = vsub.f32 %v825, %v835
    %v840 = vsub.f32 %v827, %v835
    %v841 = vsub.f32 %v829, %v838
    %v842 = vsub.f32 %v831, %v838
    %v843 = vmul.f32 %v839, 1.442695
    %v844 = vpow.pop %v843
    %v845 = vmul.f32 %v840, 1.442695
    %v846 = vpow.pop %v845
    %v847 = vmul.f32 %v841, 1.442695
    %v848 = vpow.pop %v847
    %v849 = vmul.f32 %v842, 1.442695
    %v850 = vpow.pop %v849
    %v851 = vadd.f32 %v844, %v846
    %852 = vadd.xlane.f32.xlu0 %v851
    %v853 = vpop.xlane.xlu0 %852
    %v854 = vadd.f32 %v848, %v850
    %855 = vadd.xlane.f32.xlu0 %v854
    %v856 = vpop.xlane.xlu0 %855
    %v857 = vrcp.pop %v853
    %v858 = vrcp.pop %v856
    %v859 = vmul.f32 %v844, %v857
    %v860 = vmul.f32 %v846, %v857
    %v861 = vmul.f32 %v848, %v858
    %v862 = vmul.f32 %v850, %v858
    %863 = vset.pattern.permute.xlu0 2
    %864 = vperm.xlu0 %863, %v192
    %v865 = vpop.permute.xlu0 %864
    %867 = vset.pattern.permute.xlu0 2
    %868 = vperm.xlu0 %867, %v193
    %v869 = vpop.permute.xlu0 %868
    %v871 = vmul.f32 %v865, %v859
    %v872 = vmul.f32 %v865, %v860
    %v873 = vmul.f32 %v869, %v861
    %v874 = vmul.f32 %v869, %v862
    %v875 = vadd.f32 %v786, %v871
    %v876 = vadd.f32 %v787, %v872
    %v877 = vadd.f32 %v788, %v873
    %v878 = vadd.f32 %v789, %v874
    %879 = vmatprep.subr.bf16.mxu0 %v583
    %880 = vmatpush1.bf16.msra.mxu0 %v582
    %881 = vmatprep.subr.bf16.mxu0 %v585
    %882 = vmatpush1.bf16.msra.mxu0 %v584
    %883 = vmatprep.subr.bf16.mxu0 %v587
    %884 = vmatpush1.bf16.msra.mxu0 %v586
    %885 = vmatprep.subr.bf16.mxu0 %v589
    %886 = vmatpush1.bf16.msra.mxu0 %v588
    %887 = vmatprep.subr.bf16.mxu0 %v591
    %888 = vmatpush1.bf16.msra.mxu0 %v590
    %889 = vmatprep.subr.bf16.mxu0 %v593
    %890 = vmatpush1.bf16.msra.mxu0 %v592
    %891 = vmatprep.subr.bf16.mxu0 %v595
    %892 = vmatpush1.bf16.msra.mxu0 %v594
    %893 = vmatprep.subr.bf16.mxu0 %v597
    %894 = vmatpush1.bf16.msra.mxu0 %v596
    %895 = vmatprep.subr.bf16.mxu0 0
    %896 = vmatpush1.bf16.msra.mxu0 0
    %897 = vmatprep.subr.bf16.mxu0 0
    %898 = vmatpush1.bf16.msra.mxu0 0
    %899 = vmatprep.subr.bf16.mxu0 0
    %900 = vmatpush1.bf16.msra.mxu0 0
    %901 = vmatprep.subr.bf16.mxu0 0
    %902 = vmatpush1.bf16.msra.mxu0 0
    %903 = vmatprep.subr.bf16.mxu0 0
    %904 = vmatpush1.bf16.msra.mxu0 0
    %905 = vmatprep.subr.bf16.mxu0 0
    %906 = vmatpush1.bf16.msra.mxu0 0
    %907 = vmatprep.subr.bf16.mxu0 0
    %908 = vmatpush1.bf16.msra.mxu0 0
    %909 = vmatprep.subr.bf16.mxu0 0
    %910 = vmatpush1.bf16.msra.mxu0 0
    %911 = vmatprep.mubr.bf16.mxu0 0
    %912 = vmatmul.mubr.bf16.gmra.mrb[0].mxu0 %v505
    %v913 = vpop.f32.mrb[0].mxu0
    %v914 = vadd.f32 %v527, %v913
    %v915 = vpop.f32.mrb[0].mxu0
    %v916 = vadd.f32 %v531, %v915
    %v917 = vpop.f32.mrb[0].mxu0
    %v918 = vadd.f32 %v527, %v917
    %v919 = vpop.f32.mrb[0].mxu0
    %v920 = vadd.f32 %v531, %v919
    %921 = vdwg.mxu0
    %v922 = vmax.f32 %v914, %v916
    %923 = vmax.xlane.f32.xlu0 %v922
    %v924 = vpop.xlane.xlu0 %923
    %v925 = vmax.f32 %v918, %v920
    %926 = vmax.xlane.f32.xlu0 %v925
    %v927 = vpop.xlane.xlu0 %926
    %v928 = vsub.f32 %v914, %v924
    %v929 = vsub.f32 %v916, %v924
    %v930 = vsub.f32 %v918, %v927
    %v931 = vsub.f32 %v920, %v927
    %v932 = vmul.f32 %v928, 1.442695
    %v933 = vpow.pop %v932
    %v934 = vmul.f32 %v929, 1.442695
    %v935 = vpow.pop %v934
    %v936 = vmul.f32 %v930, 1.442695
    %v937 = vpow.pop %v936
    %v938 = vmul.f32 %v931, 1.442695
    %v939 = vpow.pop %v938
    %v940 = vadd.f32 %v933, %v935
    %941 = vadd.xlane.f32.xlu0 %v940
    %v942 = vpop.xlane.xlu0 %941
    %v943 = vadd.f32 %v937, %v939
    %944 = vadd.xlane.f32.xlu0 %v943
    %v945 = vpop.xlane.xlu0 %944
    %v946 = vrcp.pop %v942
    %v947 = vrcp.pop %v945
    %v948 = vmul.f32 %v933, %v946
    %v949 = vmul.f32 %v935, %v946
    %v950 = vmul.f32 %v937, %v947
    %v951 = vmul.f32 %v939, %v947
    %952 = vset.pattern.permute.xlu0 3
    %953 = vperm.xlu0 %952, %v192
    %v954 = vpop.permute.xlu0 %953
    %956 = vset.pattern.permute.xlu0 3
    %957 = vperm.xlu0 %956, %v193
    %v958 = vpop.permute.xlu0 %957
    %v960 = vmul.f32 %v954, %v948
    %v961 = vmul.f32 %v954, %v949
    %v962 = vmul.f32 %v958, %v950
    %v963 = vmul.f32 %v958, %v951
    %v964 = vadd.f32 %v875, %v960
    %v965 = vadd.f32 %v876, %v961
    %v966 = vadd.f32 %v877, %v962
    %v967 = vadd.f32 %v878, %v963
    %v968 = vlog2.pop %v964
    %v969 = vmul.f32 %v968, 0.6931472
    %v970 = vlog2.pop %v965
    %v971 = vmul.f32 %v970, 0.6931472
    %v972 = vlog2.pop %v966
    %v973 = vmul.f32 %v972, 0.6931472
    %v974 = vlog2.pop %v967
    %v975 = vmul.f32 %v974, 0.6931472
    %976 = vst [vmem:[#allocation7] sm:$0xff] %v969
    %977 = vst [vmem:[#allocation7 + $0x8] sm:$0xff] %v971
    %978 = vst [vmem:[#allocation7 + $0x10] sm:$0xff] %v973
    %979 = vst [vmem:[#allocation7 + $0x18] sm:$0xff] %v975
    // Predicated region
    $region38: #{tpu_custom_call.1} parent=1 // pred_check
      _
    $region39: #{tpu_custom_call.1} parent=1 // pred_check_branch
      %981 = sbr.rel (0) target = $region41
    $region40: #{tpu_custom_call.1} parent=1 // pred_region
      %s983 = ssub.s32 512, 512
      %984 = vsyncadd [#allocation4], %s983
      %s985 = sshll.u32 [#allocation7], 4
      %s986 = int_to_ptr.vmem [resolvable:$true] %s985
      %991 = dma.vmem_to_hbm [thread:$0]  %s986, 512, %s7, [#allocation4], 256, 256, 16
    $region41: #{tpu_custom_call.1} parent=1 // pred_fallthru
      _
    // Predicated region
    $region42: #{tpu_custom_call.1} parent=1 // pred_check
      _
    $region43: #{tpu_custom_call.1} parent=1 // pred_check_branch
      %993 = sbr.rel (0) target = $region45
    $region44: #{tpu_custom_call.1} parent=1 // pred_region
      %994 = dma.done [#allocation4], 512
    $region45: #{tpu_custom_call.1} parent=1 // pred_fallthru
      _
    %995 = vsyncpa [#allocation3], 1
    %996 = vsyncpa [#allocation6], 1
    %997 = vsyncpa [#allocation4], 1

</llo_original>
